<compile_context>
chip_gen: v7x
topology: tpu7x:2x2x1
jax: 0.10.0
libtpu: 0.0.40
codegen_flags: <defaults>
</compile_context>

<pallas_src>
import jax
import jax.numpy as jnp
from jax import lax
from jax.experimental import pallas as pl
from jax.experimental.pallas import tpu as pltpu

LANES = 128


def _round_up(x, m):
    return (x + m - 1) // m * m


# --------------------------- fused down kernel --------------------------------

def _fused_down_kernel(x4_ref, w1_ref, w2_ref, s1_ref, o1_ref, s2_ref, o2_ref,
                       out_ref, xpad_ref, hpad_ref):
    # x4_ref : (1, 4, Hp, Wp, Cin)  the four 2x2-pool corner planes of one image
    # w1_ref : (9*Cin, Cp)          conv1 weights, im2col layout, Cout padded->Cp
    # w2_ref : (9, Cp, Cp)          conv2 weights per tap, in/out chans padded->Cp
    # s*/o*  : (1, Cp)              folded BN scale / offset (zeros in padding)
    # out_ref: (1, Hp, Wp, Cp)      lane-dense output block
    # xpad_ref: (Hp+2, Wp+2, Cin)   VMEM scratch: zero-padded pooled input
    # hpad_ref: (Hp+2, Wp+2, Cp)    VMEM scratch: zero-padded h1
    _, Hp, Wp, Cp = out_ref.shape
    Cin = x4_ref.shape[-1]
    M = Hp * Wp

    # ---- fused 2x2 max-pool: elementwise max of the four corner planes ----
    pooled = jnp.maximum(jnp.maximum(x4_ref[0, 0], x4_ref[0, 1]),
                         jnp.maximum(x4_ref[0, 2], x4_ref[0, 3]))   # (Hp, Wp, Cin)

    xpad_ref[...] = jnp.zeros_like(xpad_ref)          # zeroed halo in VMEM
    xpad_ref[1:Hp + 1, 1:Wp + 1, :] = pooled

    # ---- conv1 + BN(eval) + ReLU: one im2col matmul ----
    cols = []
    for dy in range(3):
        for dx in range(3):
            win = xpad_ref[dy:dy + Hp, dx:dx + Wp, :]           # (Hp, Wp, Cin)
            cols.append(win.reshape(M, Cin))
    col1 = jnp.concatenate(cols, axis=1)                        # (M, 9*Cin)
    acc1 = jnp.dot(col1, w1_ref[...], preferred_element_type=jnp.float32)
    h1 = jnp.maximum(acc1 * s1_ref[...] + o1_ref[...], 0.0)     # (M, Cp), f32
    # padded channels: weights/scale/offset are zero there -> relu(0) = 0

    hpad_ref[...] = jnp.zeros_like(hpad_ref)
    hpad_ref[1:Hp + 1, 1:Wp + 1, :] = h1.reshape(Hp, Wp, Cp)

    # ---- conv2 + BN(eval) + ReLU: 9 accumulated full-K (=Cp) matmuls ----
    acc2 = jnp.zeros((M, Cp), jnp.float32)
    for dy in range(3):
        for dx in range(3):
            win = hpad_ref[dy:dy + Hp, dx:dx + Wp, :].reshape(M, Cp)
            acc2 = acc2 + jnp.dot(win, w2_ref[3 * dy + dx],
                                  preferred_element_type=jnp.float32)
    y = jnp.maximum(acc2 * s2_ref[...] + o2_ref[...], 0.0)

    out_ref[0] = y.reshape(Hp, Wp, Cp).astype(out_ref.dtype)    # lane-dense store


# ----------------------------- parameter glue ----------------------------------

def _prepare_params(params, cin, cout, eps=1e-5):
    (w1, b1, g1, bt1, m1, v1, w2, b2, g2, bt2, m2, v2) = params
    cp = _round_up(cout, LANES)

    # conv1: (Cout, Cin, 3, 3) -> (dy, dx, cin, cout) -> (9*Cin, Cout) -> pad N->Cp
    w1t = jnp.transpose(w1, (2, 3, 1, 0)).reshape(9 * cin, cout).astype(jnp.float32)
    w1p = jnp.zeros((9 * cin, cp), jnp.float32).at[:, :cout].set(w1t)

    # conv2: (Cout, Cout, 3, 3) -> (dy, dx, cin2, cout) -> pad both chans -> (9, Cp, Cp)
    w2t = jnp.transpose(w2, (2, 3, 1, 0)).astype(jnp.float32)   # (3,3,cout_in,cout)
    w2p = jnp.zeros((3, 3, cp, cp), jnp.float32).at[:, :, :cout, :cout].set(w2t)
    w2p = w2p.reshape(9, cp, cp)

    def fold(bias, g, bt, m, v):
        s = g / jnp.sqrt(v + eps)
        o = bt + (bias - m) * s
        sp = jnp.zeros((1, cp), jnp.float32).at[0, :cout].set(s.astype(jnp.float32))
        op = jnp.zeros((1, cp), jnp.float32).at[0, :cout].set(o.astype(jnp.float32))
        return sp, op

    s1, o1 = fold(b1, g1, bt1, m1, v1)
    s2, o2 = fold(b2, g2, bt2, m2, v2)
    return w1p, w2p, s1, o1, s2, o2, cp


def down_forward(x_nchw, params):
    """Pallas implementation of down(in_ch, out_ch).forward (eval mode)."""
    N, Cin, H, W = x_nchw.shape
    assert H % 2 == 0 and W % 2 == 0, "MaxPool2d(2) expects even spatial dims here"
    Hp, Wp = H // 2, W // 2
    Cout = params[0].shape[0]
    w1p, w2p, s1, o1, s2, o2, Cp = _prepare_params(params, Cin, Cout)

    # Single XLA prep op (same byte count as x): NCHW -> (N, 4 pool corners, Hp, Wp, Cin)
    x4 = jnp.transpose(x_nchw.reshape(N, Cin, Hp, 2, Wp, 2),
                       (0, 3, 5, 2, 4, 1)).reshape(N, 4, Hp, Wp, Cin)

    out = pl.pallas_call(
        _fused_down_kernel,
        out_shape=jax.ShapeDtypeStruct((N, Hp, Wp, Cp), x_nchw.dtype),
        grid=(N,),
        in_specs=[
            pl.BlockSpec((1, 4, Hp, Wp, Cin), lambda n: (n, 0, 0, 0, 0)),
            pl.BlockSpec((9 * Cin, Cp), lambda n: (0, 0)),
            pl.BlockSpec((9, Cp, Cp), lambda n: (0, 0, 0)),
            pl.BlockSpec((1, Cp), lambda n: (0, 0)),
            pl.BlockSpec((1, Cp), lambda n: (0, 0)),
            pl.BlockSpec((1, Cp), lambda n: (0, 0)),
            pl.BlockSpec((1, Cp), lambda n: (0, 0)),
        ],
        out_specs=pl.BlockSpec((1, Hp, Wp, Cp), lambda n: (n, 0, 0, 0)),
        scratch_shapes=[
            pltpu.VMEM((Hp + 2, Wp + 2, Cin), jnp.float32),
            pltpu.VMEM((Hp + 2, Wp + 2, Cp), jnp.float32),
        ],
        compiler_params=pltpu.CompilerParams(
            dimension_semantics=("parallel",)),
    )(x4, w1p, w2p, s1, o1, s2, o2)

    # drop the lane padding, back to NCHW
    return jnp.transpose(out[..., :Cout], (0, 3, 1, 2))


# ----------------------------- pure-JAX reference ------------------------------

def _ref_block(h_nchw, w, b, g, bt, m, v, eps=1e-5):
    y = lax.conv_general_dilated(h_nchw, w, (1, 1), 'SAME',
                                 dimension_numbers=('NCHW', 'OIHW', 'NCHW'))
    y = y + b[None, :, None, None]
    y = (y - m[None, :, None, None]) / jnp.sqrt(v[None, :, None, None] + eps)
    y = y * g[None, :, None, None] + bt[None, :, None, None]
    return jnp.maximum(y, 0.0)


def down_reference(x_nchw, params):
    (w1, b1, g1, bt1, m1, v1, w2, b2, g2, bt2, m2, v2) = params
    N, C, H, W = x_nchw.shape
    pooled = x_nchw.reshape(N, C, H // 2, 2, W // 2, 2).max(axis=(3, 5))
    h = _ref_block(pooled, w1, b1, g1, bt1, m1, v1)
    h = _ref_block(h, w2, b2, g2, bt2, m2, v2)
    return h


# ----------------------------------- main ---------------------------------------

if __name__ == "__main__":
    N, in_ch, out_ch, H, W = 2, 4, 8, 16, 16
    key = jax.random.PRNGKey(0)
    ks = jax.random.split(key, 13)

    x = jax.random.normal(ks[0], (N, in_ch, H, W), jnp.float32)

    # deterministic synthetic parameters (eval-mode BN running stats)
    w1 = 0.2 * jax.random.normal(ks[1], (out_ch, in_ch, 3, 3), jnp.float32)
    b1 = 0.1 * jax.random.normal(ks[2], (out_ch,), jnp.float32)
    g1 = 1.0 + 0.1 * jax.random.normal(ks[3], (out_ch,), jnp.float32)
    bt1 = 0.1 * jax.random.normal(ks[4], (out_ch,), jnp.float32)
    m1 = 0.1 * jax.random.normal(ks[5], (out_ch,), jnp.float32)
    v1 = jax.random.uniform(ks[6], (out_ch,), jnp.float32, 0.5, 1.5)

    w2 = 0.2 * jax.random.normal(ks[7], (out_ch, out_ch, 3, 3), jnp.float32)
    b2 = 0.1 * jax.random.normal(ks[8], (out_ch,), jnp.float32)
    g2 = 1.0 + 0.1 * jax.random.normal(ks[9], (out_ch,), jnp.float32)
    bt2 = 0.1 * jax.random.normal(ks[10], (out_ch,), jnp.float32)
    m2 = 0.1 * jax.random.normal(ks[11], (out_ch,), jnp.float32)
    v2 = jax.random.uniform(ks[12], (out_ch,), jnp.float32, 0.5, 1.5)

    params = (w1, b1, g1, bt1, m1, v1, w2, b2, g2, bt2, m2, v2)

    out = jax.block_until_ready(down_forward(x, params))
    ref = jax.block_until_ready(down_reference(x, params))

    assert out.shape == (N, out_ch, H // 2, W // 2), out.shape
    assert jnp.allclose(out, ref, rtol=1e-4, atol=1e-4), (
        float(jnp.max(jnp.abs(out - ref))))

    print("KERNEL_OK")
</pallas_src>

<mosaic_0001>
module attributes {stable_mosaic.version = 11 : i64} {
  func.func @_fused_down_kernel(%arg0: i32, %arg1: memref<1x4x8x8x4xf32, #tpu.memory_space<vmem>>, %arg2: memref<36x128xf32, #tpu.memory_space<vmem>>, %arg3: memref<9x128x128xf32, #tpu.memory_space<vmem>>, %arg4: memref<1x128xf32, #tpu.memory_space<vmem>>, %arg5: memref<1x128xf32, #tpu.memory_space<vmem>>, %arg6: memref<1x128xf32, #tpu.memory_space<vmem>>, %arg7: memref<1x128xf32, #tpu.memory_space<vmem>>, %arg8: memref<1x8x8x128xf32, #tpu.memory_space<vmem>>, %arg9: memref<10x10x4xf32, #tpu.memory_space<vmem>>, %arg10: memref<10x10x128xf32, #tpu.memory_space<vmem>>) attributes {dimension_semantics = [#tpu.dimension_semantics<parallel>], iteration_bounds = array<i64: 2>, scalar_prefetch = 0 : i64, scratch_operands = 2 : i64, tpu.core_type = #tpu.core_type<tc>, window_params = [{transform_indices = @transform_0, window_bounds = array<i64: 1, 4, 8, 8, 4>}, {pipeline_mode = #tpu.pipeline_mode<synchronous>, transform_indices = @transform_1, window_bounds = array<i64: 36, 128>}, {pipeline_mode = #tpu.pipeline_mode<synchronous>, transform_indices = @transform_2, window_bounds = array<i64: 9, 128, 128>}, {pipeline_mode = #tpu.pipeline_mode<synchronous>, transform_indices = @transform_3, window_bounds = array<i64: 1, 128>}, {pipeline_mode = #tpu.pipeline_mode<synchronous>, transform_indices = @transform_4, window_bounds = array<i64: 1, 128>}, {pipeline_mode = #tpu.pipeline_mode<synchronous>, transform_indices = @transform_5, window_bounds = array<i64: 1, 128>}, {pipeline_mode = #tpu.pipeline_mode<synchronous>, transform_indices = @transform_6, window_bounds = array<i64: 1, 128>}, {transform_indices = @transform_7, window_bounds = array<i64: 1, 8, 8, 128>}]} {
    %c0 = arith.constant 0 : index
    %c0_0 = arith.constant 0 : index
    %c0_1 = arith.constant 0 : index
    %c0_2 = arith.constant 0 : index
    %c0_3 = arith.constant 0 : index
    %0 = vector.load %arg1[%c0, %c0_0, %c0_1, %c0_2, %c0_3] : memref<1x4x8x8x4xf32, #tpu.memory_space<vmem>>, vector<1x1x8x8x4xf32>
    %1 = vector.shape_cast %0 : vector<1x1x8x8x4xf32> to vector<8x8x4xf32>
    %c0_4 = arith.constant 0 : index
    %c1 = arith.constant 1 : index
    %c0_5 = arith.constant 0 : index
    %c0_6 = arith.constant 0 : index
    %c0_7 = arith.constant 0 : index
    %2 = vector.load %arg1[%c0_4, %c1, %c0_5, %c0_6, %c0_7] : memref<1x4x8x8x4xf32, #tpu.memory_space<vmem>>, vector<1x1x8x8x4xf32>
    %3 = vector.shape_cast %2 : vector<1x1x8x8x4xf32> to vector<8x8x4xf32>
    %4 = arith.maximumf %1, %3 : vector<8x8x4xf32>
    %c0_8 = arith.constant 0 : index
    %c2 = arith.constant 2 : index
    %c0_9 = arith.constant 0 : index
    %c0_10 = arith.constant 0 : index
    %c0_11 = arith.constant 0 : index
    %5 = vector.load %arg1[%c0_8, %c2, %c0_9, %c0_10, %c0_11] : memref<1x4x8x8x4xf32, #tpu.memory_space<vmem>>, vector<1x1x8x8x4xf32>
    %6 = vector.shape_cast %5 : vector<1x1x8x8x4xf32> to vector<8x8x4xf32>
    %c0_12 = arith.constant 0 : index
    %c3 = arith.constant 3 : index
    %c0_13 = arith.constant 0 : index
    %c0_14 = arith.constant 0 : index
    %c0_15 = arith.constant 0 : index
    %7 = vector.load %arg1[%c0_12, %c3, %c0_13, %c0_14, %c0_15] : memref<1x4x8x8x4xf32, #tpu.memory_space<vmem>>, vector<1x1x8x8x4xf32>
    %8 = vector.shape_cast %7 : vector<1x1x8x8x4xf32> to vector<8x8x4xf32>
    %9 = arith.maximumf %6, %8 : vector<8x8x4xf32>
    %10 = arith.maximumf %4, %9 : vector<8x8x4xf32>
    %cst = arith.constant 0.000000e+00 : f32
    %11 = vector.broadcast %cst : f32 to vector<10x10x4xf32>
    %c0_16 = arith.constant 0 : index
    %c0_17 = arith.constant 0 : index
    %c0_18 = arith.constant 0 : index
    %12 = vector.load %arg9[%c0_16, %c0_17, %c0_18] : memref<10x10x4xf32, #tpu.memory_space<vmem>>, vector<10x10x4xf32>
    tpu.vector_store %arg9[%c0_16, %c0_17, %c0_18], %11 {strides = array<i32>} : memref<10x10x4xf32, #tpu.memory_space<vmem>>, vector<10x10x4xf32>,
    %c1_19 = arith.constant 1 : index
    %c1_20 = arith.constant 1 : index
    %c0_21 = arith.constant 0 : index
    %13 = vector.load %arg9[%c1_19, %c1_20, %c0_21] : memref<10x10x4xf32, #tpu.memory_space<vmem>>, vector<8x8x4xf32>
    tpu.vector_store %arg9[%c1_19, %c1_20, %c0_21], %10 {strides = array<i32>} : memref<10x10x4xf32, #tpu.memory_space<vmem>>, vector<8x8x4xf32>,
    %c0_22 = arith.constant 0 : index
    %c0_23 = arith.constant 0 : index
    %c0_24 = arith.constant 0 : index
    %14 = vector.load %arg9[%c0_22, %c0_23, %c0_24] : memref<10x10x4xf32, #tpu.memory_space<vmem>>, vector<8x8x4xf32>
    %15 = vector.shape_cast %14 : vector<8x8x4xf32> to vector<64x4xf32>
    %c0_25 = arith.constant 0 : index
    %c1_26 = arith.constant 1 : index
    %c0_27 = arith.constant 0 : index
    %16 = vector.load %arg9[%c0_25, %c1_26, %c0_27] : memref<10x10x4xf32, #tpu.memory_space<vmem>>, vector<8x8x4xf32>
    %17 = vector.shape_cast %16 : vector<8x8x4xf32> to vector<64x4xf32>
    %c0_28 = arith.constant 0 : index
    %c2_29 = arith.constant 2 : index
    %c0_30 = arith.constant 0 : index
    %18 = vector.load %arg9[%c0_28, %c2_29, %c0_30] : memref<10x10x4xf32, #tpu.memory_space<vmem>>, vector<8x8x4xf32>
    %19 = vector.shape_cast %18 : vector<8x8x4xf32> to vector<64x4xf32>
    %c1_31 = arith.constant 1 : index
    %c0_32 = arith.constant 0 : index
    %c0_33 = arith.constant 0 : index
    %20 = vector.load %arg9[%c1_31, %c0_32, %c0_33] : memref<10x10x4xf32, #tpu.memory_space<vmem>>, vector<8x8x4xf32>
    %21 = vector.shape_cast %20 : vector<8x8x4xf32> to vector<64x4xf32>
    %c1_34 = arith.constant 1 : index
    %c1_35 = arith.constant 1 : index
    %c0_36 = arith.constant 0 : index
    %22 = vector.load %arg9[%c1_34, %c1_35, %c0_36] : memref<10x10x4xf32, #tpu.memory_space<vmem>>, vector<8x8x4xf32>
    %23 = vector.shape_cast %22 : vector<8x8x4xf32> to vector<64x4xf32>
    %c1_37 = arith.constant 1 : index
    %c2_38 = arith.constant 2 : index
    %c0_39 = arith.constant 0 : index
    %24 = vector.load %arg9[%c1_37, %c2_38, %c0_39] : memref<10x10x4xf32, #tpu.memory_space<vmem>>, vector<8x8x4xf32>
    %25 = vector.shape_cast %24 : vector<8x8x4xf32> to vector<64x4xf32>
    %c2_40 = arith.constant 2 : index
    %c0_41 = arith.constant 0 : index
    %c0_42 = arith.constant 0 : index
    %26 = vector.load %arg9[%c2_40, %c0_41, %c0_42] : memref<10x10x4xf32, #tpu.memory_space<vmem>>, vector<8x8x4xf32>
    %27 = vector.shape_cast %26 : vector<8x8x4xf32> to vector<64x4xf32>
    %c2_43 = arith.constant 2 : index
    %c1_44 = arith.constant 1 : index
    %c0_45 = arith.constant 0 : index
    %28 = vector.load %arg9[%c2_43, %c1_44, %c0_45] : memref<10x10x4xf32, #tpu.memory_space<vmem>>, vector<8x8x4xf32>
    %29 = vector.shape_cast %28 : vector<8x8x4xf32> to vector<64x4xf32>
    %c2_46 = arith.constant 2 : index
    %c2_47 = arith.constant 2 : index
    %c0_48 = arith.constant 0 : index
    %30 = vector.load %arg9[%c2_46, %c2_47, %c0_48] : memref<10x10x4xf32, #tpu.memory_space<vmem>>, vector<8x8x4xf32>
    %31 = vector.shape_cast %30 : vector<8x8x4xf32> to vector<64x4xf32>
    %32 = tpu.concatenate %15, %17, %19, %21, %23, %25, %27, %29, %31 in 1 : vector<64x4xf32>, vector<64x4xf32>, vector<64x4xf32>, vector<64x4xf32>, vector<64x4xf32>, vector<64x4xf32>, vector<64x4xf32>, vector<64x4xf32>, vector<64x4xf32> -> vector<64x36xf32>
    %c0_49 = arith.constant 0 : index
    %c0_50 = arith.constant 0 : index
    %33 = vector.load %arg2[%c0_49, %c0_50] : memref<36x128xf32, #tpu.memory_space<vmem>>, vector<36x128xf32>
    %cst_51 = arith.constant dense<0.000000e+00> : vector<64x128xf32>
    %34 = tpu.matmul %32, %33, %cst_51 {dimension_numbers = #tpu.dot_dimension_numbers<[1], [0], [0], [1], [0, 0, 1, 1], [], []>} : vector<64x36xf32>, vector<36x128xf32>, vector<64x128xf32> -> vector<64x128xf32>
    %c0_52 = arith.constant 0 : index
    %c0_53 = arith.constant 0 : index
    %35 = vector.load %arg4[%c0_52, %c0_53] : memref<1x128xf32, #tpu.memory_space<vmem>>, vector<1x128xf32>
    %36 = vector.broadcast %35 : vector<1x128xf32> to vector<64x128xf32>
    %37 = arith.mulf %34, %36 : vector<64x128xf32>
    %c0_54 = arith.constant 0 : index
    %c0_55 = arith.constant 0 : index
    %38 = vector.load %arg5[%c0_54, %c0_55] : memref<1x128xf32, #tpu.memory_space<vmem>>, vector<1x128xf32>
    %39 = vector.broadcast %38 : vector<1x128xf32> to vector<64x128xf32>
    %40 = arith.addf %37, %39 : vector<64x128xf32>
    %cst_56 = arith.constant 0.000000e+00 : f32
    %41 = vector.broadcast %cst_56 : f32 to vector<64x128xf32>
    %42 = arith.maximumf %40, %41 : vector<64x128xf32>
    %cst_57 = arith.constant 0.000000e+00 : f32
    %43 = vector.broadcast %cst_57 : f32 to vector<10x10x128xf32>
    %c0_58 = arith.constant 0 : index
    %c0_59 = arith.constant 0 : index
    %c0_60 = arith.constant 0 : index
    %44 = vector.load %arg10[%c0_58, %c0_59, %c0_60] : memref<10x10x128xf32, #tpu.memory_space<vmem>>, vector<10x10x128xf32>
    tpu.vector_store %arg10[%c0_58, %c0_59, %c0_60], %43 {strides = array<i32>} : memref<10x10x128xf32, #tpu.memory_space<vmem>>, vector<10x10x128xf32>,
    %45 = vector.shape_cast %42 : vector<64x128xf32> to vector<8x8x128xf32>
    %c1_61 = arith.constant 1 : index
    %c1_62 = arith.constant 1 : index
    %c0_63 = arith.constant 0 : index
    %46 = vector.load %arg10[%c1_61, %c1_62, %c0_63] : memref<10x10x128xf32, #tpu.memory_space<vmem>>, vector<8x8x128xf32>
    tpu.vector_store %arg10[%c1_61, %c1_62, %c0_63], %45 {strides = array<i32>} : memref<10x10x128xf32, #tpu.memory_space<vmem>>, vector<8x8x128xf32>,
    %cst_64 = arith.constant 0.000000e+00 : f32
    %47 = vector.broadcast %cst_64 : f32 to vector<64x128xf32>
    %c0_65 = arith.constant 0 : index
    %c0_66 = arith.constant 0 : index
    %c0_67 = arith.constant 0 : index
    %48 = vector.load %arg10[%c0_65, %c0_66, %c0_67] : memref<10x10x128xf32, #tpu.memory_space<vmem>>, vector<8x8x128xf32>
    %49 = vector.shape_cast %48 : vector<8x8x128xf32> to vector<64x128xf32>
    %c0_68 = arith.constant 0 : index
    %c0_69 = arith.constant 0 : index
    %c0_70 = arith.constant 0 : index
    %50 = vector.load %arg3[%c0_68, %c0_69, %c0_70] : memref<9x128x128xf32, #tpu.memory_space<vmem>>, vector<1x128x128xf32>
    %51 = vector.shape_cast %50 : vector<1x128x128xf32> to vector<128x128xf32>
    %cst_71 = arith.constant dense<0.000000e+00> : vector<64x128xf32>
    %52 = tpu.matmul %49, %51, %cst_71 {dimension_numbers = #tpu.dot_dimension_numbers<[1], [0], [0], [1], [0, 0, 1, 1], [], []>} : vector<64x128xf32>, vector<128x128xf32>, vector<64x128xf32> -> vector<64x128xf32>
    %53 = arith.addf %47, %52 : vector<64x128xf32>
    %c0_72 = arith.constant 0 : index
    %c1_73 = arith.constant 1 : index
    %c0_74 = arith.constant 0 : index
    %54 = vector.load %arg10[%c0_72, %c1_73, %c0_74] : memref<10x10x128xf32, #tpu.memory_space<vmem>>, vector<8x8x128xf32>
    %55 = vector.shape_cast %54 : vector<8x8x128xf32> to vector<64x128xf32>
    %c1_75 = arith.constant 1 : index
    %c0_76 = arith.constant 0 : index
    %c0_77 = arith.constant 0 : index
    %56 = vector.load %arg3[%c1_75, %c0_76, %c0_77] : memref<9x128x128xf32, #tpu.memory_space<vmem>>, vector<1x128x128xf32>
    %57 = vector.shape_cast %56 : vector<1x128x128xf32> to vector<128x128xf32>
    %cst_78 = arith.constant dense<0.000000e+00> : vector<64x128xf32>
    %58 = tpu.matmul %55, %57, %cst_78 {dimension_numbers = #tpu.dot_dimension_numbers<[1], [0], [0], [1], [0, 0, 1, 1], [], []>} : vector<64x128xf32>, vector<128x128xf32>, vector<64x128xf32> -> vector<64x128xf32>
    %59 = arith.addf %53, %58 : vector<64x128xf32>
    %c0_79 = arith.constant 0 : index
    %c2_80 = arith.constant 2 : index
    %c0_81 = arith.constant 0 : index
    %60 = vector.load %arg10[%c0_79, %c2_80, %c0_81] : memref<10x10x128xf32, #tpu.memory_space<vmem>>, vector<8x8x128xf32>
    %61 = vector.shape_cast %60 : vector<8x8x128xf32> to vector<64x128xf32>
    %c2_82 = arith.constant 2 : index
    %c0_83 = arith.constant 0 : index
    %c0_84 = arith.constant 0 : index
    %62 = vector.load %arg3[%c2_82, %c0_83, %c0_84] : memref<9x128x128xf32, #tpu.memory_space<vmem>>, vector<1x128x128xf32>
    %63 = vector.shape_cast %62 : vector<1x128x128xf32> to vector<128x128xf32>
    %cst_85 = arith.constant dense<0.000000e+00> : vector<64x128xf32>
    %64 = tpu.matmul %61, %63, %cst_85 {dimension_numbers = #tpu.dot_dimension_numbers<[1], [0], [0], [1], [0, 0, 1, 1], [], []>} : vector<64x128xf32>, vector<128x128xf32>, vector<64x128xf32> -> vector<64x128xf32>
    %65 = arith.addf %59, %64 : vector<64x128xf32>
    %c1_86 = arith.constant 1 : index
    %c0_87 = arith.constant 0 : index
    %c0_88 = arith.constant 0 : index
    %66 = vector.load %arg10[%c1_86, %c0_87, %c0_88] : memref<10x10x128xf32, #tpu.memory_space<vmem>>, vector<8x8x128xf32>
    %67 = vector.shape_cast %66 : vector<8x8x128xf32> to vector<64x128xf32>
    %c3_89 = arith.constant 3 : index
    %c0_90 = arith.constant 0 : index
    %c0_91 = arith.constant 0 : index
    %68 = vector.load %arg3[%c3_89, %c0_90, %c0_91] : memref<9x128x128xf32, #tpu.memory_space<vmem>>, vector<1x128x128xf32>
    %69 = vector.shape_cast %68 : vector<1x128x128xf32> to vector<128x128xf32>
    %cst_92 = arith.constant dense<0.000000e+00> : vector<64x128xf32>
    %70 = tpu.matmul %67, %69, %cst_92 {dimension_numbers = #tpu.dot_dimension_numbers<[1], [0], [0], [1], [0, 0, 1, 1], [], []>} : vector<64x128xf32>, vector<128x128xf32>, vector<64x128xf32> -> vector<64x128xf32>
    %71 = arith.addf %65, %70 : vector<64x128xf32>
    %c1_93 = arith.constant 1 : index
    %c1_94 = arith.constant 1 : index
    %c0_95 = arith.constant 0 : index
    %72 = vector.load %arg10[%c1_93, %c1_94, %c0_95] : memref<10x10x128xf32, #tpu.memory_space<vmem>>, vector<8x8x128xf32>
    %73 = vector.shape_cast %72 : vector<8x8x128xf32> to vector<64x128xf32>
    %c4 = arith.constant 4 : index
    %c0_96 = arith.constant 0 : index
    %c0_97 = arith.constant 0 : index
    %74 = vector.load %arg3[%c4, %c0_96, %c0_97] : memref<9x128x128xf32, #tpu.memory_space<vmem>>, vector<1x128x128xf32>
    %75 = vector.shape_cast %74 : vector<1x128x128xf32> to vector<128x128xf32>
    %cst_98 = arith.constant dense<0.000000e+00> : vector<64x128xf32>
    %76 = tpu.matmul %73, %75, %cst_98 {dimension_numbers = #tpu.dot_dimension_numbers<[1], [0], [0], [1], [0, 0, 1, 1], [], []>} : vector<64x128xf32>, vector<128x128xf32>, vector<64x128xf32> -> vector<64x128xf32>
    %77 = arith.addf %71, %76 : vector<64x128xf32>
    %c1_99 = arith.constant 1 : index
    %c2_100 = arith.constant 2 : index
    %c0_101 = arith.constant 0 : index
    %78 = vector.load %arg10[%c1_99, %c2_100, %c0_101] : memref<10x10x128xf32, #tpu.memory_space<vmem>>, vector<8x8x128xf32>
    %79 = vector.shape_cast %78 : vector<8x8x128xf32> to vector<64x128xf32>
    %c5 = arith.constant 5 : index
    %c0_102 = arith.constant 0 : index
    %c0_103 = arith.constant 0 : index
    %80 = vector.load %arg3[%c5, %c0_102, %c0_103] : memref<9x128x128xf32, #tpu.memory_space<vmem>>, vector<1x128x128xf32>
    %81 = vector.shape_cast %80 : vector<1x128x128xf32> to vector<128x128xf32>
    %cst_104 = arith.constant dense<0.000000e+00> : vector<64x128xf32>
    %82 = tpu.matmul %79, %81, %cst_104 {dimension_numbers = #tpu.dot_dimension_numbers<[1], [0], [0], [1], [0, 0, 1, 1], [], []>} : vector<64x128xf32>, vector<128x128xf32>, vector<64x128xf32> -> vector<64x128xf32>
    %83 = arith.addf %77, %82 : vector<64x128xf32>
    %c2_105 = arith.constant 2 : index
    %c0_106 = arith.constant 0 : index
    %c0_107 = arith.constant 0 : index
    %84 = vector.load %arg10[%c2_105, %c0_106, %c0_107] : memref<10x10x128xf32, #tpu.memory_space<vmem>>, vector<8x8x128xf32>
    %85 = vector.shape_cast %84 : vector<8x8x128xf32> to vector<64x128xf32>
    %c6 = arith.constant 6 : index
    %c0_108 = arith.constant 0 : index
    %c0_109 = arith.constant 0 : index
    %86 = vector.load %arg3[%c6, %c0_108, %c0_109] : memref<9x128x128xf32, #tpu.memory_space<vmem>>, vector<1x128x128xf32>
    %87 = vector.shape_cast %86 : vector<1x128x128xf32> to vector<128x128xf32>
    %cst_110 = arith.constant dense<0.000000e+00> : vector<64x128xf32>
    %88 = tpu.matmul %85, %87, %cst_110 {dimension_numbers = #tpu.dot_dimension_numbers<[1], [0], [0], [1], [0, 0, 1, 1], [], []>} : vector<64x128xf32>, vector<128x128xf32>, vector<64x128xf32> -> vector<64x128xf32>
    %89 = arith.addf %83, %88 : vector<64x128xf32>
    %c2_111 = arith.constant 2 : index
    %c1_112 = arith.constant 1 : index
    %c0_113 = arith.constant 0 : index
    %90 = vector.load %arg10[%c2_111, %c1_112, %c0_113] : memref<10x10x128xf32, #tpu.memory_space<vmem>>, vector<8x8x128xf32>
    %91 = vector.shape_cast %90 : vector<8x8x128xf32> to vector<64x128xf32>
    %c7 = arith.constant 7 : index
    %c0_114 = arith.constant 0 : index
    %c0_115 = arith.constant 0 : index
    %92 = vector.load %arg3[%c7, %c0_114, %c0_115] : memref<9x128x128xf32, #tpu.memory_space<vmem>>, vector<1x128x128xf32>
    %93 = vector.shape_cast %92 : vector<1x128x128xf32> to vector<128x128xf32>
    %cst_116 = arith.constant dense<0.000000e+00> : vector<64x128xf32>
    %94 = tpu.matmul %91, %93, %cst_116 {dimension_numbers = #tpu.dot_dimension_numbers<[1], [0], [0], [1], [0, 0, 1, 1], [], []>} : vector<64x128xf32>, vector<128x128xf32>, vector<64x128xf32> -> vector<64x128xf32>
    %95 = arith.addf %89, %94 : vector<64x128xf32>
    %c2_117 = arith.constant 2 : index
    %c2_118 = arith.constant 2 : index
    %c0_119 = arith.constant 0 : index
    %96 = vector.load %arg10[%c2_117, %c2_118, %c0_119] : memref<10x10x128xf32, #tpu.memory_space<vmem>>, vector<8x8x128xf32>
    %97 = vector.shape_cast %96 : vector<8x8x128xf32> to vector<64x128xf32>
    %c8 = arith.constant 8 : index
    %c0_120 = arith.constant 0 : index
    %c0_121 = arith.constant 0 : index
    %98 = vector.load %arg3[%c8, %c0_120, %c0_121] : memref<9x128x128xf32, #tpu.memory_space<vmem>>, vector<1x128x128xf32>
    %99 = vector.shape_cast %98 : vector<1x128x128xf32> to vector<128x128xf32>
    %cst_122 = arith.constant dense<0.000000e+00> : vector<64x128xf32>
    %100 = tpu.matmul %97, %99, %cst_122 {dimension_numbers = #tpu.dot_dimension_numbers<[1], [0], [0], [1], [0, 0, 1, 1], [], []>} : vector<64x128xf32>, vector<128x128xf32>, vector<64x128xf32> -> vector<64x128xf32>
    %101 = arith.addf %95, %100 : vector<64x128xf32>
    %c0_123 = arith.constant 0 : index
    %c0_124 = arith.constant 0 : index
    %102 = vector.load %arg6[%c0_123, %c0_124] : memref<1x128xf32, #tpu.memory_space<vmem>>, vector<1x128xf32>
    %103 = vector.broadcast %102 : vector<1x128xf32> to vector<64x128xf32>
    %104 = arith.mulf %101, %103 : vector<64x128xf32>
    %c0_125 = arith.constant 0 : index
    %c0_126 = arith.constant 0 : index
    %105 = vector.load %arg7[%c0_125, %c0_126] : memref<1x128xf32, #tpu.memory_space<vmem>>, vector<1x128xf32>
    %106 = vector.broadcast %105 : vector<1x128xf32> to vector<64x128xf32>
    %107 = arith.addf %104, %106 : vector<64x128xf32>
    %cst_127 = arith.constant 0.000000e+00 : f32
    %108 = vector.broadcast %cst_127 : f32 to vector<64x128xf32>
    %109 = arith.maximumf %107, %108 : vector<64x128xf32>
    %110 = vector.shape_cast %109 : vector<64x128xf32> to vector<8x8x128xf32>
    %c0_128 = arith.constant 0 : index
    %c0_129 = arith.constant 0 : index
    %c0_130 = arith.constant 0 : index
    %c0_131 = arith.constant 0 : index
    %111 = vector.load %arg8[%c0_128, %c0_129, %c0_130, %c0_131] : memref<1x8x8x128xf32, #tpu.memory_space<vmem>>, vector<1x8x8x128xf32>
    %112 = vector.shape_cast %111 : vector<1x8x8x128xf32> to vector<8x8x128xf32>
    %113 = vector.shape_cast %110 : vector<8x8x128xf32> to vector<1x8x8x128xf32>
    tpu.vector_store %arg8[%c0_128, %c0_129, %c0_130, %c0_131], %113 {strides = array<i32>} : memref<1x8x8x128xf32, #tpu.memory_space<vmem>>, vector<1x8x8x128xf32>,
    return
  }
  func.func @transform_0(%arg0: i32) -> (i32, i32, i32, i32, i32) {
    %c0_i32 = arith.constant 0 : i32
    %c0_i32_0 = arith.constant 0 : i32
    %c0_i32_1 = arith.constant 0 : i32
    %c0_i32_2 = arith.constant 0 : i32
    %c0_i32_3 = arith.constant 0 : i32
    return %arg0, %c0_i32, %c0_i32_0, %c0_i32_1, %c0_i32_2 : i32, i32, i32, i32, i32
  }
  func.func @transform_1(%arg0: i32) -> (i32, i32) {
    %c0_i32 = arith.constant 0 : i32
    %c0_i32_0 = arith.constant 0 : i32
    %c0_i32_1 = arith.constant 0 : i32
    return %c0_i32, %c0_i32_0 : i32, i32
  }
  func.func @transform_2(%arg0: i32) -> (i32, i32, i32) {
    %c0_i32 = arith.constant 0 : i32
    %c0_i32_0 = arith.constant 0 : i32
    %c0_i32_1 = arith.constant 0 : i32
    %c0_i32_2 = arith.constant 0 : i32
    return %c0_i32, %c0_i32_0, %c0_i32_1 : i32, i32, i32
  }
  func.func @transform_3(%arg0: i32) -> (i32, i32) {
    %c0_i32 = arith.constant 0 : i32
    %c0_i32_0 = arith.constant 0 : i32
    %c0_i32_1 = arith.constant 0 : i32
    return %c0_i32, %c0_i32_0 : i32, i32
  }
  func.func @transform_4(%arg0: i32) -> (i32, i32) {
    %c0_i32 = arith.constant 0 : i32
    %c0_i32_0 = arith.constant 0 : i32
    %c0_i32_1 = arith.constant 0 : i32
    return %c0_i32, %c0_i32_0 : i32, i32
  }
  func.func @transform_5(%arg0: i32) -> (i32, i32) {
    %c0_i32 = arith.constant 0 : i32
    %c0_i32_0 = arith.constant 0 : i32
    %c0_i32_1 = arith.constant 0 : i32
    return %c0_i32, %c0_i32_0 : i32, i32
  }
  func.func @transform_6(%arg0: i32) -> (i32, i32) {
    %c0_i32 = arith.constant 0 : i32
    %c0_i32_0 = arith.constant 0 : i32
    %c0_i32_1 = arith.constant 0 : i32
    return %c0_i32, %c0_i32_0 : i32, i32
  }
  func.func @transform_7(%arg0: i32) -> (i32, i32, i32, i32) {
    %c0_i32 = arith.constant 0 : i32
    %c0_i32_0 = arith.constant 0 : i32
    %c0_i32_1 = arith.constant 0 : i32
    %c0_i32_2 = arith.constant 0 : i32
    return %arg0, %c0_i32, %c0_i32_0, %c0_i32_1 : i32, i32, i32, i32
  }
}

</mosaic_0001>

<llo_original>
// kernel: tpu_custom_call.1
$region0: #{tpu_custom_call.1}
  #allocation0 [shape = 'u32[]', space=smem, size = 0x4, offset = 0x4, fixed_abs, tag = 'smem constant byte address 0x4 - core index']
  #allocation1 [shape = 'u32[144,128]{1,0:T(1,128)}', space=vmem, size = 0x12000, scoped, tag = 'internal scratch']
  #allocation2 [shape = 'f32[10,10,4]{2,1,0:T(8,128)}', space=vmem, size = 0x14000, scoped, tag = 'scratch operand']
  #allocation3 [shape = 'f32[10,10,128]{2,1,0:T(8,128)}', space=vmem, size = 0x14000, scoped, tag = 'scratch operand']
  %s0 = inlined_call_operand.vmem [shape: f32[2,4,8,8,4], index: 0, kind: input, shape index: {}]
  %s1 = inlined_call_operand.vmem [shape: f32[36,128], index: 1, kind: input, shape index: {}]
  %s2 = inlined_call_operand.hbm [shape: f32[9,128,128], index: 2, kind: input, shape index: {}]
  %s3 = inlined_call_operand.vmem [shape: f32[1,128], index: 3, kind: input, shape index: {}]
  %s4 = inlined_call_operand.vmem [shape: f32[1,128], index: 4, kind: input, shape index: {}]
  %s5 = inlined_call_operand.vmem [shape: f32[1,128], index: 5, kind: input, shape index: {}]
  %s6 = inlined_call_operand.vmem [shape: f32[1,128], index: 6, kind: input, shape index: {}]
  %s7 = inlined_call_operand.hbm [shape: f32[2,8,8,128], index: 7, kind: output, shape index: {}]
  %s8 = sld [smem:[#allocation0]]
  $region65: #{tpu_custom_call.1} parent=0
    _
  %s10 = ssub.s32 1, %s8
  %s11 = scalar_select 0, %s10, %s8
  $region1: #{tpu_custom_call.1} parent=0
    #allocation4 [shape = 'u8[589824]{0}', space=vmem, size = 0x90000, scoped, tag = 'input window, operand 2, single buffered']
    #allocation5 [shape = 's32[2]{0}', space=sflag, size = 0x8, scoped, tag = 'scoped memory for tpu_custom_call.1']
    #allocation6 [shape = 's32[2]{0}', space=sflag, size = 0x8, scoped, tag = 'scoped memory for tpu_custom_call.1']
    #allocation7 [shape = 'u8[65536]{0}', space=vmem, size = 0x10000, scoped, tag = 'output window, operand 0']
    %12 = vsyncpa [#allocation5], 0
    %13 = vsyncpa [#allocation6], 0
    %s14 = scalar_lea.sflag [#allocation6], 1
    %15 = vsyncpa %s14, 0
    loop: start=0, step=1, limit=4
    $region2: #{tpu_custom_call.1} parent=1 // loop_pre_header
      _
    $region3: #{tpu_custom_call.1} parent=1 // loop_header
      %s17 = sphi 0, %s21
      %p18 = scmp.ge.s32.totalorder %s17, 4
      %s27 = sphi 0, %s29
      %s30 = sphi 0, %s27
      %s31 = sphi 0, %s30
      %s47 = sphi 0, %s31
      %s51 = sphi 0, %s51
      %s53 = sphi 0, %s51
      %s54 = sphi 0, %s53
      %s68 = sphi 0, %s54
      %s72 = sphi 0, %s72
      %s74 = sphi 0, %s72
      %s75 = sphi 0, %s74
      %s89 = sphi 0, %s75
      %s93 = sphi 0, %s93
      %s95 = sphi 0, %s93
      %s96 = sphi 0, %s95
      %s110 = sphi 0, %s96
      %s114 = sphi 0, %s114
      %s116 = sphi 0, %s114
      %s117 = sphi 0, %s116
      %s131 = sphi 0, %s117
      %s135 = sphi 0, %s135
      %s137 = sphi 0, %s135
      %s138 = sphi 0, %s137
      %s152 = sphi 0, %s138
      %s156 = sphi 0, %s156
      %s158 = sphi 0, %s156
      %s159 = sphi 0, %s158
      %s173 = sphi 0, %s159
      %s179 = sphi 0, %s181
      %s182 = sphi 0, %s179
      %s183 = sphi 0, %s182
      %s199 = sphi 0, %s183
    $region4: #{tpu_custom_call.1} parent=1 // loop_header_branch
      %20 = sbr.rel (%p18) target = $region8
    $region5: #{tpu_custom_call.1} parent=1 // loop_body
      %s22 = ssub.s32 %s17, 1
      %s23 = ssub.s32 %s17, 2
      %s24 = sadd.s32 %s17, 1
      %s25 = ssub.s32 %s17, %s24
      %p26 = scmp.eq.s32.totalorder %s25, 0
      %s28 = sadd.s32 %s27, 1
      %s29 = scalar_select %p26, %s27, %s28
      %p32 = pneg %p26
      %p33 = scmp.eq.s32.totalorder %s17, 1
      %p34 = por %p32, %p33
      %p35 = scmp.ne.s32.totalorder %s27, %s30
      %p36 = scmp.eq.s32.totalorder %s17, 0
      %p37 = por %p35, %p36
      %p38 = scmp.ne.s32.totalorder %s27, %s30
      %p39 = scmp.eq.s32.totalorder %s22, 1
      %p40 = por %p38, %p39
      %p41 = scmp.ne.s32.totalorder %s30, %s31
      %p42 = scmp.eq.s32.totalorder %s22, 0
      %p43 = por %p41, %p42
      %p44 = scmp.ne.s32.totalorder %s30, %s31
      %p45 = scmp.eq.s32.totalorder %s23, 1
      %p46 = por %p44, %p45
      %p48 = scmp.ne.s32.totalorder %s31, %s47
      %p49 = scmp.eq.s32.totalorder %s23, 0
      %p50 = por %p48, %p49
      %s52 = sadd.s32 %s51, 1
      %p55 = scmp.eq.s32.totalorder %s17, 1
      %p56 = scmp.ne.s32.totalorder %s51, %s53
      %p57 = scmp.eq.s32.totalorder %s17, 0
      %p58 = por %p56, %p57
      %p59 = scmp.ne.s32.totalorder %s51, %s53
      %p60 = scmp.eq.s32.totalorder %s22, 1
      %p61 = por %p59, %p60
      %p62 = scmp.ne.s32.totalorder %s53, %s54
      %p63 = scmp.eq.s32.totalorder %s22, 0
      %p64 = por %p62, %p63
      %p65 = scmp.ne.s32.totalorder %s53, %s54
      %p66 = scmp.eq.s32.totalorder %s23, 1
      %p67 = por %p65, %p66
      %p69 = scmp.ne.s32.totalorder %s54, %s68
      %p70 = scmp.eq.s32.totalorder %s23, 0
      %p71 = por %p69, %p70
      %s73 = sadd.s32 %s72, 1
      %p76 = scmp.eq.s32.totalorder %s17, 1
      %p77 = scmp.ne.s32.totalorder %s72, %s74
      %p78 = scmp.eq.s32.totalorder %s17, 0
      %p79 = por %p77, %p78
      %p80 = scmp.ne.s32.totalorder %s72, %s74
      %p81 = scmp.eq.s32.totalorder %s22, 1
      %p82 = por %p80, %p81
      %p83 = scmp.ne.s32.totalorder %s74, %s75
      %p84 = scmp.eq.s32.totalorder %s22, 0
      %p85 = por %p83, %p84
      %p86 = scmp.ne.s32.totalorder %s74, %s75
      %p87 = scmp.eq.s32.totalorder %s23, 1
      %p88 = por %p86, %p87
      %p90 = scmp.ne.s32.totalorder %s75, %s89
      %p91 = scmp.eq.s32.totalorder %s23, 0
      %p92 = por %p90, %p91
      %s94 = sadd.s32 %s93, 1
      %p97 = scmp.eq.s32.totalorder %s17, 1
      %p98 = scmp.ne.s32.totalorder %s93, %s95
      %p99 = scmp.eq.s32.totalorder %s17, 0
      %p100 = por %p98, %p99
      %p101 = scmp.ne.s32.totalorder %s93, %s95
      %p102 = scmp.eq.s32.totalorder %s22, 1
      %p103 = por %p101, %p102
      %p104 = scmp.ne.s32.totalorder %s95, %s96
      %p105 = scmp.eq.s32.totalorder %s22, 0
      %p106 = por %p104, %p105
      %p107 = scmp.ne.s32.totalorder %s95, %s96
      %p108 = scmp.eq.s32.totalorder %s23, 1
      %p109 = por %p107, %p108
      %p111 = scmp.ne.s32.totalorder %s96, %s110
      %p112 = scmp.eq.s32.totalorder %s23, 0
      %p113 = por %p111, %p112
      %s115 = sadd.s32 %s114, 1
      %p118 = scmp.eq.s32.totalorder %s17, 1
      %p119 = scmp.ne.s32.totalorder %s114, %s116
      %p120 = scmp.eq.s32.totalorder %s17, 0
      %p121 = por %p119, %p120
      %p122 = scmp.ne.s32.totalorder %s114, %s116
      %p123 = scmp.eq.s32.totalorder %s22, 1
      %p124 = por %p122, %p123
      %p125 = scmp.ne.s32.totalorder %s116, %s117
      %p126 = scmp.eq.s32.totalorder %s22, 0
      %p127 = por %p125, %p126
      %p128 = scmp.ne.s32.totalorder %s116, %s117
      %p129 = scmp.eq.s32.totalorder %s23, 1
      %p130 = por %p128, %p129
      %p132 = scmp.ne.s32.totalorder %s117, %s131
      %p133 = scmp.eq.s32.totalorder %s23, 0
      %p134 = por %p132, %p133
      %s136 = sadd.s32 %s135, 1
      %p139 = scmp.eq.s32.totalorder %s17, 1
      %p140 = scmp.ne.s32.totalorder %s135, %s137
      %p141 = scmp.eq.s32.totalorder %s17, 0
      %p142 = por %p140, %p141
      %p143 = scmp.ne.s32.totalorder %s135, %s137
      %p144 = scmp.eq.s32.totalorder %s22, 1
      %p145 = por %p143, %p144
      %p146 = scmp.ne.s32.totalorder %s137, %s138
      %p147 = scmp.eq.s32.totalorder %s22, 0
      %p148 = por %p146, %p147
      %p149 = scmp.ne.s32.totalorder %s137, %s138
      %p150 = scmp.eq.s32.totalorder %s23, 1
      %p151 = por %p149, %p150
      %p153 = scmp.ne.s32.totalorder %s138, %s152
      %p154 = scmp.eq.s32.totalorder %s23, 0
      %p155 = por %p153, %p154
      %s157 = sadd.s32 %s156, 1
      %p160 = scmp.eq.s32.totalorder %s17, 1
      %p161 = scmp.ne.s32.totalorder %s156, %s158
      %p162 = scmp.eq.s32.totalorder %s17, 0
      %p163 = por %p161, %p162
      %p164 = scmp.ne.s32.totalorder %s156, %s158
      %p165 = scmp.eq.s32.totalorder %s22, 1
      %p166 = por %p164, %p165
      %p167 = scmp.ne.s32.totalorder %s158, %s159
      %p168 = scmp.eq.s32.totalorder %s22, 0
      %p169 = por %p167, %p168
      %p170 = scmp.ne.s32.totalorder %s158, %s159
      %p171 = scmp.eq.s32.totalorder %s23, 1
      %p172 = por %p170, %p171
      %p174 = scmp.ne.s32.totalorder %s159, %s173
      %p175 = scmp.eq.s32.totalorder %s23, 0
      %p176 = por %p174, %p175
      %s177 = ssub.s32 %s17, %s24
      %p178 = scmp.eq.s32.totalorder %s177, 0
      %s180 = sadd.s32 %s179, 1
      %s181 = scalar_select %p178, %s179, %s180
      %p184 = pneg %p178
      %p185 = scmp.eq.s32.totalorder %s17, 1
      %p186 = por %p184, %p185
      %p187 = scmp.ne.s32.totalorder %s179, %s182
      %p188 = scmp.eq.s32.totalorder %s17, 0
      %p189 = por %p187, %p188
      %p190 = scmp.ne.s32.totalorder %s179, %s182
      %p191 = scmp.eq.s32.totalorder %s22, 1
      %p192 = por %p190, %p191
      %p193 = scmp.ne.s32.totalorder %s182, %s183
      %p194 = scmp.eq.s32.totalorder %s22, 0
      %p195 = por %p193, %p194
      %p196 = scmp.ne.s32.totalorder %s182, %s183
      %p197 = scmp.eq.s32.totalorder %s23, 1
      %p198 = por %p196, %p197
      %p200 = scmp.ne.s32.totalorder %s183, %s199
      %p201 = scmp.eq.s32.totalorder %s23, 0
      %p202 = por %p200, %p201
      %p203 = scmp.le.s32.totalorder 1, %s17
      %p204 = scmp.lt.s32.totalorder %s17, 3
      %p205 = pnand %p203, %p204
      %p206 = pneg %p205
      // Predicated region
      $region9: #{tpu_custom_call.1} parent=5 // pred_check
        _
      $region10: #{tpu_custom_call.1} parent=5 // pred_check_branch
        %208 = sbr.rel (%p205) target = $region12
      $region11: #{tpu_custom_call.1} parent=5 // pred_region
        %s209 = ssub.s32 %s17, 1
        // Predicated region
        $region13: #{tpu_custom_call.1} parent=11 // pred_check
          %p210 = pneg %p64
        $region14: #{tpu_custom_call.1} parent=11 // pred_check_branch
          %212 = sbr.rel (%p210) target = $region16
        $region15: #{tpu_custom_call.1} parent=11 // pred_region
          _
        $region16: #{tpu_custom_call.1} parent=11 // pred_fallthru
          _
        // Predicated region
        $region17: #{tpu_custom_call.1} parent=11 // pred_check
          %p213 = pneg %p85
        $region18: #{tpu_custom_call.1} parent=11 // pred_check_branch
          %215 = sbr.rel (%p213) target = $region20
        $region19: #{tpu_custom_call.1} parent=11 // pred_region
          %s217 = ssub.s32 18432, 18432
          %218 = vsyncadd [#allocation5], %s217
          %s219 = sshll.u32 [#allocation4], 4
          %s220 = int_to_ptr.vmem [resolvable:$true] %s219
          %225 = dma.hbm_to_vmem [thread:$0]  %s2, 18432, %s220, [#allocation5], 128, 128, 8
        $region20: #{tpu_custom_call.1} parent=11 // pred_fallthru
          _
        // Predicated region
        $region21: #{tpu_custom_call.1} parent=11 // pred_check
          %p226 = pneg %p106
        $region22: #{tpu_custom_call.1} parent=11 // pred_check_branch
          %228 = sbr.rel (%p226) target = $region24
        $region23: #{tpu_custom_call.1} parent=11 // pred_region
          _
        $region24: #{tpu_custom_call.1} parent=11 // pred_fallthru
          _
        // Predicated region
        $region25: #{tpu_custom_call.1} parent=11 // pred_check
          %p229 = pneg %p127
        $region26: #{tpu_custom_call.1} parent=11 // pred_check_branch
          %231 = sbr.rel (%p229) target = $region28
        $region27: #{tpu_custom_call.1} parent=11 // pred_region
          _
        $region28: #{tpu_custom_call.1} parent=11 // pred_fallthru
          _
        // Predicated region
        $region29: #{tpu_custom_call.1} parent=11 // pred_check
          %p232 = pneg %p148
        $region30: #{tpu_custom_call.1} parent=11 // pred_check_branch
          %234 = sbr.rel (%p232) target = $region32
        $region31: #{tpu_custom_call.1} parent=11 // pred_region
          _
        $region32: #{tpu_custom_call.1} parent=11 // pred_fallthru
          _
        // Predicated region
        $region33: #{tpu_custom_call.1} parent=11 // pred_check
          %p235 = pneg %p169
        $region34: #{tpu_custom_call.1} parent=11 // pred_check_branch
          %237 = sbr.rel (%p235) target = $region36
        $region35: #{tpu_custom_call.1} parent=11 // pred_region
          _
        $region36: #{tpu_custom_call.1} parent=11 // pred_fallthru
          _
      $region12: #{tpu_custom_call.1} parent=5 // pred_fallthru
        _
      %p238 = scmp.lt.s32.totalorder %s17, 2
      // Predicated region
      $region37: #{tpu_custom_call.1} parent=5 // pred_check
        %p239 = pneg %p238
      $region38: #{tpu_custom_call.1} parent=5 // pred_check_branch
        %241 = sbr.rel (%p239) target = $region40
      $region39: #{tpu_custom_call.1} parent=5 // pred_region
        // Predicated region
        $region41: #{tpu_custom_call.1} parent=39 // pred_check
          %p242 = pneg %p37
        $region42: #{tpu_custom_call.1} parent=39 // pred_check_branch
          %244 = sbr.rel (%p242) target = $region44
        $region43: #{tpu_custom_call.1} parent=39 // pred_region
          %p245 = scmp.lt.s32.totalorder %s17, 1
          %s246 = scalar_select %p245, %s17, 1
          %s247 = smul.addr %s246, 32
          %s248 = smul.addr %s247, 8
          %s249 = scalar_lea.vmem %s0, %s248
        $region44: #{tpu_custom_call.1} parent=39 // pred_fallthru
          _
      $region40: #{tpu_custom_call.1} parent=5 // pred_fallthru
        _
      %p250 = scmp.le.s32.totalorder 1, %s17
      %p251 = scmp.lt.s32.totalorder %s17, 3
      %p252 = pnand %p250, %p251
      %p253 = pneg %p252
      // Predicated region
      $region45: #{tpu_custom_call.1} parent=5 // pred_check
        _
      $region46: #{tpu_custom_call.1} parent=5 // pred_check_branch
        %255 = sbr.rel (%p252) target = $region48
      $region47: #{tpu_custom_call.1} parent=5 // pred_region
        %s256 = ssub.s32 %s17, 1
        // Predicated region
        $region49: #{tpu_custom_call.1} parent=47 // pred_check
          %p257 = pneg %p85
        $region50: #{tpu_custom_call.1} parent=47 // pred_check_branch
          %259 = sbr.rel (%p257) target = $region52
        $region51: #{tpu_custom_call.1} parent=47 // pred_region
          %260 = dma.done [#allocation5], 18432
        $region52: #{tpu_custom_call.1} parent=47 // pred_fallthru
          _
        %p261 = scmp.lt.s32.totalorder %s22, 1
        %s262 = scalar_select %p261, %s22, 1
        %s263 = smul.addr %s262, 32
        %s264 = smul.addr %s263, 8
        %s265 = scalar_lea.vmem %s0, %s264
        %p266 = pneg %p43
        %p267 = pneg %p40
        %p268 = pneg %p64
        %p269 = pneg %p61
        %p270 = pneg %p85
        %p271 = pneg %p82
        %p272 = pneg %p106
        %p273 = pneg %p103
        %p274 = pneg %p127
        %p275 = pneg %p124
        %p276 = pneg %p148
        %p277 = pneg %p145
        %p278 = pneg %p169
        %p279 = pneg %p166
        %p280 = pneg %p195
        %p281 = pneg %p192
        %s282 = sand.u32 %s182, 1
        %s283 = scalar_lea.sflag [#allocation6], %s282
        %s284 = sand.u32 %s182, 1
        %s285 = smul.addr %s284, 64
        %s286 = scalar_lea.vmem [#allocation7], %s285
        %p287 = scmp.lt.s32.totalorder %s22, 1
        %s288 = scalar_select %p287, %s22, 1
        %s289 = smul.addr %s288, 32
        %s290 = smul.addr %s289, 8
        %s291 = scalar_lea.vmem %s0, %s290
        %v292 = vld [vmem:[%s291] sm:$0xff]
        %v293 = vld [vmem:[%s291 + $0x8] sm:$0xff]
        %v294 = vld [vmem:[%s291 + $0x10] sm:$0xff]
        %v295 = vld [vmem:[%s291 + $0x18] sm:$0xff]
        %v296 = vld [vmem:[%s291 + $0x20] sm:$0xff]
        %v297 = vld [vmem:[%s291 + $0x28] sm:$0xff]
        %v298 = vld [vmem:[%s291 + $0x30] sm:$0xff]
        %v299 = vld [vmem:[%s291 + $0x38] sm:$0xff]
        %s300 = scalar_lea.vmem %s291, 64
        %v301 = vld [vmem:[%s300] sm:$0xff]
        %v302 = vld [vmem:[%s300 + $0x8] sm:$0xff]
        %v303 = vld [vmem:[%s300 + $0x10] sm:$0xff]
        %v304 = vld [vmem:[%s300 + $0x18] sm:$0xff]
        %v305 = vld [vmem:[%s300 + $0x20] sm:$0xff]
        %v306 = vld [vmem:[%s300 + $0x28] sm:$0xff]
        %v307 = vld [vmem:[%s300 + $0x30] sm:$0xff]
        %v308 = vld [vmem:[%s300 + $0x38] sm:$0xff]
        %v309 = vmax.f32 %v292, %v301
        %v310 = vmax.f32 %v293, %v302
        %v311 = vmax.f32 %v294, %v303
        %v312 = vmax.f32 %v295, %v304
        %v313 = vmax.f32 %v296, %v305
        %v314 = vmax.f32 %v297, %v306
        %v315 = vmax.f32 %v298, %v307
        %v316 = vmax.f32 %v299, %v308
        %s317 = scalar_lea.vmem %s291, 128
        %v318 = vld [vmem:[%s317] sm:$0xff]
        %v319 = vld [vmem:[%s317 + $0x8] sm:$0xff]
        %v320 = vld [vmem:[%s317 + $0x10] sm:$0xff]
        %v321 = vld [vmem:[%s317 + $0x18] sm:$0xff]
        %v322 = vld [vmem:[%s317 + $0x20] sm:$0xff]
        %v323 = vld [vmem:[%s317 + $0x28] sm:$0xff]
        %v324 = vld [vmem:[%s317 + $0x30] sm:$0xff]
        %v325 = vld [vmem:[%s317 + $0x38] sm:$0xff]
        %s326 = scalar_lea.vmem %s291, 192
        %v327 = vld [vmem:[%s326] sm:$0xff]
        %v328 = vld [vmem:[%s326 + $0x8] sm:$0xff]
        %v329 = vld [vmem:[%s326 + $0x10] sm:$0xff]
        %v330 = vld [vmem:[%s326 + $0x18] sm:$0xff]
        %v331 = vld [vmem:[%s326 + $0x20] sm:$0xff]
        %v332 = vld [vmem:[%s326 + $0x28] sm:$0xff]
        %v333 = vld [vmem:[%s326 + $0x30] sm:$0xff]
        %v334 = vld [vmem:[%s326 + $0x38] sm:$0xff]
        %v335 = vmax.f32 %v318, %v327
        %v336 = vmax.f32 %v319, %v328
        %v337 = vmax.f32 %v320, %v329
        %v338 = vmax.f32 %v321, %v330
        %v339 = vmax.f32 %v322, %v331
        %v340 = vmax.f32 %v323, %v332
        %v341 = vmax.f32 %v324, %v333
        %v342 = vmax.f32 %v325, %v334
        %v343 = vmax.f32 %v309, %v335
        %v344 = vmax.f32 %v310, %v336
        %v345 = vmax.f32 %v311, %v337
        %v346 = vmax.f32 %v312, %v338
        %v347 = vmax.f32 %v313, %v339
        %v348 = vmax.f32 %v314, %v340
        %v349 = vmax.f32 %v315, %v341
        %v350 = vmax.f32 %v316, %v342
        %vm351 = vcmask 31744
        %352 = vst.msk [vmem:[#allocation2] sm:$0xff] %vm351, 0.0
        %vm353 = vcmask 25600
        %354 = vst.msk [vmem:[#allocation2 + $0x8] sm:$0x3] %vm353, 0.0
        %355 = vst.msk [vmem:[#allocation2 + $0x10] sm:$0xff] %vm351, 0.0
        %356 = vst.msk [vmem:[#allocation2 + $0x18] sm:$0x3] %vm353, 0.0
        %357 = vst.msk [vmem:[#allocation2 + $0x20] sm:$0xff] %vm351, 0.0
        %358 = vst.msk [vmem:[#allocation2 + $0x28] sm:$0x3] %vm353, 0.0
        %359 = vst.msk [vmem:[#allocation2 + $0x30] sm:$0xff] %vm351, 0.0
        %360 = vst.msk [vmem:[#allocation2 + $0x38] sm:$0x3] %vm353, 0.0
        %361 = vst.msk [vmem:[#allocation2 + $0x40] sm:$0xff] %vm351, 0.0
        %362 = vst.msk [vmem:[#allocation2 + $0x48] sm:$0x3] %vm353, 0.0
        %363 = vst.msk [vmem:[#allocation2 + $0x50] sm:$0xff] %vm351, 0.0
        %364 = vst.msk [vmem:[#allocation2 + $0x58] sm:$0x3] %vm353, 0.0
        %365 = vst.msk [vmem:[#allocation2 + $0x60] sm:$0xff] %vm351, 0.0
        %366 = vst.msk [vmem:[#allocation2 + $0x68] sm:$0x3] %vm353, 0.0
        %367 = vst.msk [vmem:[#allocation2 + $0x70] sm:$0xff] %vm351, 0.0
        %368 = vst.msk [vmem:[#allocation2 + $0x78] sm:$0x3] %vm353, 0.0
        %369 = vst.msk [vmem:[#allocation2 + $0x80] sm:$0xff] %vm351, 0.0
        %370 = vst.msk [vmem:[#allocation2 + $0x88] sm:$0x3] %vm353, 0.0
        %371 = vst.msk [vmem:[#allocation2 + $0x90] sm:$0xff] %vm351, 0.0
        %372 = vst.msk [vmem:[#allocation2 + $0x98] sm:$0x3] %vm353, 0.0
        %s373 = scalar_lea.vmem [#allocation2], 16
        %374 = vst.msk [vmem:[%s373 + $0x1] sm:$0xff] %vm351, %v343
        %375 = vst.msk [vmem:[%s373 + $0x11] sm:$0xff] %vm351, %v344
        %376 = vst.msk [vmem:[%s373 + $0x21] sm:$0xff] %vm351, %v345
        %377 = vst.msk [vmem:[%s373 + $0x31] sm:$0xff] %vm351, %v346
        %378 = vst.msk [vmem:[%s373 + $0x41] sm:$0xff] %vm351, %v347
        %379 = vst.msk [vmem:[%s373 + $0x51] sm:$0xff] %vm351, %v348
        %380 = vst.msk [vmem:[%s373 + $0x61] sm:$0xff] %vm351, %v349
        %381 = vst.msk [vmem:[%s373 + $0x71] sm:$0xff] %vm351, %v350
        %v382 = vld [vmem:[#allocation2] sm:$0xff]
        %v383 = vld [vmem:[#allocation2 + $0x10] sm:$0xff]
        %v384 = vld [vmem:[#allocation2 + $0x20] sm:$0xff]
        %v385 = vld [vmem:[#allocation2 + $0x30] sm:$0xff]
        %v386 = vld [vmem:[#allocation2 + $0x40] sm:$0xff]
        %v387 = vld [vmem:[#allocation2 + $0x50] sm:$0xff]
        %v388 = vld [vmem:[#allocation2 + $0x60] sm:$0xff]
        %v389 = vld [vmem:[#allocation2 + $0x70] sm:$0xff]
        %v390 = vld [vmem:[#allocation2 + $0x1] sm:$0xff]
        %v391 = vld [vmem:[#allocation2 + $0x11] sm:$0xff]
        %v392 = vld [vmem:[#allocation2 + $0x21] sm:$0xff]
        %v393 = vld [vmem:[#allocation2 + $0x31] sm:$0xff]
        %v394 = vld [vmem:[#allocation2 + $0x41] sm:$0xff]
        %v395 = vld [vmem:[#allocation2 + $0x51] sm:$0xff]
        %v396 = vld [vmem:[#allocation2 + $0x61] sm:$0xff]
        %v397 = vld [vmem:[#allocation2 + $0x71] sm:$0xff]
        %v398 = vld [vmem:[#allocation2 + $0x2] sm:$0xff]
        %v399 = vld [vmem:[#allocation2 + $0x12] sm:$0xff]
        %v400 = vld [vmem:[#allocation2 + $0x22] sm:$0xff]
        %v401 = vld [vmem:[#allocation2 + $0x32] sm:$0xff]
        %v402 = vld [vmem:[#allocation2 + $0x42] sm:$0xff]
        %v403 = vld [vmem:[#allocation2 + $0x52] sm:$0xff]
        %v404 = vld [vmem:[#allocation2 + $0x62] sm:$0xff]
        %v405 = vld [vmem:[#allocation2 + $0x72] sm:$0xff]
        %v406 = vld [vmem:[%s373] sm:$0xff]
        %v407 = vld [vmem:[%s373 + $0x10] sm:$0xff]
        %v408 = vld [vmem:[%s373 + $0x20] sm:$0xff]
        %v409 = vld [vmem:[%s373 + $0x30] sm:$0xff]
        %v410 = vld [vmem:[%s373 + $0x40] sm:$0xff]
        %v411 = vld [vmem:[%s373 + $0x50] sm:$0xff]
        %v412 = vld [vmem:[%s373 + $0x60] sm:$0xff]
        %v413 = vld [vmem:[%s373 + $0x70] sm:$0xff]
        %v414 = vld [vmem:[%s373 + $0x1] sm:$0xff]
        %v415 = vld [vmem:[%s373 + $0x11] sm:$0xff]
        %v416 = vld [vmem:[%s373 + $0x21] sm:$0xff]
        %v417 = vld [vmem:[%s373 + $0x31] sm:$0xff]
        %v418 = vld [vmem:[%s373 + $0x41] sm:$0xff]
        %v419 = vld [vmem:[%s373 + $0x51] sm:$0xff]
        %v420 = vld [vmem:[%s373 + $0x61] sm:$0xff]
        %v421 = vld [vmem:[%s373 + $0x71] sm:$0xff]
        %v422 = vld [vmem:[%s373 + $0x2] sm:$0xff]
        %v423 = vld [vmem:[%s373 + $0x12] sm:$0xff]
        %v424 = vld [vmem:[%s373 + $0x22] sm:$0xff]
        %v425 = vld [vmem:[%s373 + $0x32] sm:$0xff]
        %v426 = vld [vmem:[%s373 + $0x42] sm:$0xff]
        %v427 = vld [vmem:[%s373 + $0x52] sm:$0xff]
        %v428 = vld [vmem:[%s373 + $0x62] sm:$0xff]
        %v429 = vld [vmem:[%s373 + $0x72] sm:$0xff]
        %s430 = scalar_lea.vmem [#allocation2], 32
        %v431 = vld [vmem:[%s430] sm:$0xff]
        %v432 = vld [vmem:[%s430 + $0x10] sm:$0xff]
        %v433 = vld [vmem:[%s430 + $0x20] sm:$0xff]
        %v434 = vld [vmem:[%s430 + $0x30] sm:$0xff]
        %v435 = vld [vmem:[%s430 + $0x40] sm:$0xff]
        %v436 = vld [vmem:[%s430 + $0x50] sm:$0xff]
        %v437 = vld [vmem:[%s430 + $0x60] sm:$0xff]
        %v438 = vld [vmem:[%s430 + $0x70] sm:$0xff]
        %v439 = vld [vmem:[%s430 + $0x1] sm:$0xff]
        %v440 = vld [vmem:[%s430 + $0x11] sm:$0xff]
        %v441 = vld [vmem:[%s430 + $0x21] sm:$0xff]
        %v442 = vld [vmem:[%s430 + $0x31] sm:$0xff]
        %v443 = vld [vmem:[%s430 + $0x41] sm:$0xff]
        %v444 = vld [vmem:[%s430 + $0x51] sm:$0xff]
        %v445 = vld [vmem:[%s430 + $0x61] sm:$0xff]
        %v446 = vld [vmem:[%s430 + $0x71] sm:$0xff]
        %v447 = vld [vmem:[%s430 + $0x2] sm:$0xff]
        %v448 = vld [vmem:[%s430 + $0x12] sm:$0xff]
        %v449 = vld [vmem:[%s430 + $0x22] sm:$0xff]
        %v450 = vld [vmem:[%s430 + $0x32] sm:$0xff]
        %v451 = vld [vmem:[%s430 + $0x42] sm:$0xff]
        %v452 = vld [vmem:[%s430 + $0x52] sm:$0xff]
        %v453 = vld [vmem:[%s430 + $0x62] sm:$0xff]
        %v454 = vld [vmem:[%s430 + $0x72] sm:$0xff]
        %463 = vrot.lane.b32.xlu0 %v390, 4
        %v464 = vpop.permute.xlu0 %463
        %465 = vrot.lane.b32.xlu0 %v391, 4
        %v466 = vpop.permute.xlu0 %465
        %467 = vrot.lane.b32.xlu0 %v392, 4
        %v468 = vpop.permute.xlu0 %467
        %469 = vrot.lane.b32.xlu0 %v393, 4
        %v470 = vpop.permute.xlu0 %469
        %471 = vrot.lane.b32.xlu0 %v394, 4
        %v472 = vpop.permute.xlu0 %471
        %473 = vrot.lane.b32.xlu0 %v395, 4
        %v474 = vpop.permute.xlu0 %473
        %475 = vrot.lane.b32.xlu0 %v396, 4
        %v476 = vpop.permute.xlu0 %475
        %477 = vrot.lane.b32.xlu0 %v397, 4
        %v478 = vpop.permute.xlu0 %477
        %495 = vrot.lane.b32.xlu0 %v398, 8
        %v496 = vpop.permute.xlu0 %495
        %497 = vrot.lane.b32.xlu0 %v399, 8
        %v498 = vpop.permute.xlu0 %497
        %499 = vrot.lane.b32.xlu0 %v400, 8
        %v500 = vpop.permute.xlu0 %499
        %501 = vrot.lane.b32.xlu0 %v401, 8
        %v502 = vpop.permute.xlu0 %501
        %503 = vrot.lane.b32.xlu0 %v402, 8
        %v504 = vpop.permute.xlu0 %503
        %505 = vrot.lane.b32.xlu0 %v403, 8
        %v506 = vpop.permute.xlu0 %505
        %507 = vrot.lane.b32.xlu0 %v404, 8
        %v508 = vpop.permute.xlu0 %507
        %509 = vrot.lane.b32.xlu0 %v405, 8
        %v510 = vpop.permute.xlu0 %509
        %527 = vrot.lane.b32.xlu0 %v406, 12
        %v528 = vpop.permute.xlu0 %527
        %529 = vrot.lane.b32.xlu0 %v407, 12
        %v530 = vpop.permute.xlu0 %529
        %531 = vrot.lane.b32.xlu0 %v408, 12
        %v532 = vpop.permute.xlu0 %531
        %533 = vrot.lane.b32.xlu0 %v409, 12
        %v534 = vpop.permute.xlu0 %533
        %535 = vrot.lane.b32.xlu0 %v410, 12
        %v536 = vpop.permute.xlu0 %535
        %537 = vrot.lane.b32.xlu0 %v411, 12
        %v538 = vpop.permute.xlu0 %537
        %539 = vrot.lane.b32.xlu0 %v412, 12
        %v540 = vpop.permute.xlu0 %539
        %541 = vrot.lane.b32.xlu0 %v413, 12
        %v542 = vpop.permute.xlu0 %541
        %559 = vrot.lane.b32.xlu0 %v414, 16
        %v560 = vpop.permute.xlu0 %559
        %561 = vrot.lane.b32.xlu0 %v415, 16
        %v562 = vpop.permute.xlu0 %561
        %563 = vrot.lane.b32.xlu0 %v416, 16
        %v564 = vpop.permute.xlu0 %563
        %565 = vrot.lane.b32.xlu0 %v417, 16
        %v566 = vpop.permute.xlu0 %565
        %567 = vrot.lane.b32.xlu0 %v418, 16
        %v568 = vpop.permute.xlu0 %567
        %569 = vrot.lane.b32.xlu0 %v419, 16
        %v570 = vpop.permute.xlu0 %569
        %571 = vrot.lane.b32.xlu0 %v420, 16
        %v572 = vpop.permute.xlu0 %571
        %573 = vrot.lane.b32.xlu0 %v421, 16
        %v574 = vpop.permute.xlu0 %573
        %591 = vrot.lane.b32.xlu0 %v422, 20
        %v592 = vpop.permute.xlu0 %591
        %593 = vrot.lane.b32.xlu0 %v423, 20
        %v594 = vpop.permute.xlu0 %593
        %595 = vrot.lane.b32.xlu0 %v424, 20
        %v596 = vpop.permute.xlu0 %595
        %597 = vrot.lane.b32.xlu0 %v425, 20
        %v598 = vpop.permute.xlu0 %597
        %599 = vrot.lane.b32.xlu0 %v426, 20
        %v600 = vpop.permute.xlu0 %599
        %601 = vrot.lane.b32.xlu0 %v427, 20
        %v602 = vpop.permute.xlu0 %601
        %603 = vrot.lane.b32.xlu0 %v428, 20
        %v604 = vpop.permute.xlu0 %603
        %605 = vrot.lane.b32.xlu0 %v429, 20
        %v606 = vpop.permute.xlu0 %605
        %623 = vrot.lane.b32.xlu0 %v431, 24
        %v624 = vpop.permute.xlu0 %623
        %625 = vrot.lane.b32.xlu0 %v432, 24
        %v626 = vpop.permute.xlu0 %625
        %627 = vrot.lane.b32.xlu0 %v433, 24
        %v628 = vpop.permute.xlu0 %627
        %629 = vrot.lane.b32.xlu0 %v434, 24
        %v630 = vpop.permute.xlu0 %629
        %631 = vrot.lane.b32.xlu0 %v435, 24
        %v632 = vpop.permute.xlu0 %631
        %633 = vrot.lane.b32.xlu0 %v436, 24
        %v634 = vpop.permute.xlu0 %633
        %635 = vrot.lane.b32.xlu0 %v437, 24
        %v636 = vpop.permute.xlu0 %635
        %637 = vrot.lane.b32.xlu0 %v438, 24
        %v638 = vpop.permute.xlu0 %637
        %655 = vrot.lane.b32.xlu0 %v439, 28
        %v656 = vpop.permute.xlu0 %655
        %657 = vrot.lane.b32.xlu0 %v440, 28
        %v658 = vpop.permute.xlu0 %657
        %659 = vrot.lane.b32.xlu0 %v441, 28
        %v660 = vpop.permute.xlu0 %659
        %661 = vrot.lane.b32.xlu0 %v442, 28
        %v662 = vpop.permute.xlu0 %661
        %663 = vrot.lane.b32.xlu0 %v443, 28
        %v664 = vpop.permute.xlu0 %663
        %665 = vrot.lane.b32.xlu0 %v444, 28
        %v666 = vpop.permute.xlu0 %665
        %667 = vrot.lane.b32.xlu0 %v445, 28
        %v668 = vpop.permute.xlu0 %667
        %669 = vrot.lane.b32.xlu0 %v446, 28
        %v670 = vpop.permute.xlu0 %669
        %687 = vrot.lane.b32.xlu0 %v447, 32
        %v688 = vpop.permute.xlu0 %687
        %689 = vrot.lane.b32.xlu0 %v448, 32
        %v690 = vpop.permute.xlu0 %689
        %691 = vrot.lane.b32.xlu0 %v449, 32
        %v692 = vpop.permute.xlu0 %691
        %693 = vrot.lane.b32.xlu0 %v450, 32
        %v694 = vpop.permute.xlu0 %693
        %695 = vrot.lane.b32.xlu0 %v451, 32
        %v696 = vpop.permute.xlu0 %695
        %697 = vrot.lane.b32.xlu0 %v452, 32
        %v698 = vpop.permute.xlu0 %697
        %699 = vrot.lane.b32.xlu0 %v453, 32
        %v700 = vpop.permute.xlu0 %699
        %701 = vrot.lane.b32.xlu0 %v454, 32
        %v702 = vpop.permute.xlu0 %701
        %v711 = vsel %vm351, %v382, %v464
        %v712 = vsel %vm351, %v383, %v466
        %v713 = vsel %vm351, %v384, %v468
        %v714 = vsel %vm351, %v385, %v470
        %v715 = vsel %vm351, %v386, %v472
        %v716 = vsel %vm351, %v387, %v474
        %v717 = vsel %vm351, %v388, %v476
        %v718 = vsel %vm351, %v389, %v478
        %vm719 = vcmask 64512
        %v720 = vsel %vm719, %v711, %v496
        %v721 = vsel %vm719, %v712, %v498
        %v722 = vsel %vm719, %v713, %v500
        %v723 = vsel %vm719, %v714, %v502
        %v724 = vsel %vm719, %v715, %v504
        %v725 = vsel %vm719, %v716, %v506
        %v726 = vsel %vm719, %v717, %v508
        %v727 = vsel %vm719, %v718, %v510
        %vm728 = vcmask 97280
        %v729 = vsel %vm728, %v720, %v528
        %v730 = vsel %vm728, %v721, %v530
        %v731 = vsel %vm728, %v722, %v532
        %v732 = vsel %vm728, %v723, %v534
        %v733 = vsel %vm728, %v724, %v536
        %v734 = vsel %vm728, %v725, %v538
        %v735 = vsel %vm728, %v726, %v540
        %v736 = vsel %vm728, %v727, %v542
        %vm737 = vcmask 130048
        %v738 = vsel %vm737, %v729, %v560
        %v739 = vsel %vm737, %v730, %v562
        %v740 = vsel %vm737, %v731, %v564
        %v741 = vsel %vm737, %v732, %v566
        %v742 = vsel %vm737, %v733, %v568
        %v743 = vsel %vm737, %v734, %v570
        %v744 = vsel %vm737, %v735, %v572
        %v745 = vsel %vm737, %v736, %v574
        %vm746 = vcmask 162816
        %v747 = vsel %vm746, %v738, %v592
        %v748 = vsel %vm746, %v739, %v594
        %v749 = vsel %vm746, %v740, %v596
        %v750 = vsel %vm746, %v741, %v598
        %v751 = vsel %vm746, %v742, %v600
        %v752 = vsel %vm746, %v743, %v602
        %v753 = vsel %vm746, %v744, %v604
        %v754 = vsel %vm746, %v745, %v606
        %vm755 = vcmask 195584
        %v756 = vsel %vm755, %v747, %v624
        %v757 = vsel %vm755, %v748, %v626
        %v758 = vsel %vm755, %v749, %v628
        %v759 = vsel %vm755, %v750, %v630
        %v760 = vsel %vm755, %v751, %v632
        %v761 = vsel %vm755, %v752, %v634
        %v762 = vsel %vm755, %v753, %v636
        %v763 = vsel %vm755, %v754, %v638
        %vm764 = vcmask 228352
        %v765 = vsel %vm764, %v756, %v656
        %v766 = vsel %vm764, %v757, %v658
        %v767 = vsel %vm764, %v758, %v660
        %v768 = vsel %vm764, %v759, %v662
        %v769 = vsel %vm764, %v760, %v664
        %v770 = vsel %vm764, %v761, %v666
        %v771 = vsel %vm764, %v762, %v668
        %v772 = vsel %vm764, %v763, %v670
        %vm773 = vcmask 261120
        %v774 = vsel %vm773, %v765, %v688
        %v775 = vsel %vm773, %v766, %v690
        %v776 = vsel %vm773, %v767, %v692
        %v777 = vsel %vm773, %v768, %v694
        %v778 = vsel %vm773, %v769, %v696
        %v779 = vsel %vm773, %v770, %v698
        %v780 = vsel %vm773, %v771, %v700
        %v781 = vsel %vm773, %v772, %v702
        %v782 = vld [vmem:[%s1] sm:$0xff]
        %v783 = vld [vmem:[%s1 + $0x8] sm:$0xff]
        %v784 = vld [vmem:[%s1 + $0x10] sm:$0xff]
        %v785 = vld [vmem:[%s1 + $0x18] sm:$0xff]
        %v786 = vld [vmem:[%s1 + $0x20] sm:$0xf]
        %vm787 = vcmask 293888
        %v789 = vsel %vm787, %v774, 0
        %v792 = vsel %vm787, %v775, 0
        %v795 = vsel %vm787, %v776, 0
        %v798 = vsel %vm787, %v777, 0
        %v801 = vsel %vm787, %v778, 0
        %v804 = vsel %vm787, %v779, 0
        %v807 = vsel %vm787, %v780, 0
        %v810 = vsel %vm787, %v781, 0
        %vm812 = vcmask 1043456
        %v814 = vsel %vm812, %v786, 0
        %816 = vmatprep.subr.mxu0 0.0
        %817 = vmatpush1.msra.mxu0 %v782
        %818 = vmatprep.subr.mxu0 0.0
        %819 = vmatpush1.msra.mxu0 %v783
        %820 = vmatprep.subr.mxu0 0.0
        %821 = vmatpush1.msra.mxu0 %v784
        %822 = vmatprep.subr.mxu0 0.0
        %823 = vmatpush1.msra.mxu0 %v785
        %824 = vmatprep.subr.mxu0 0.0
        %825 = vmatpush1.msra.mxu0 %v814
        %826 = vmatprep.subr.mxu0 0.0
        %827 = vmatpush1.msra.mxu0 0.0
        %828 = vmatprep.subr.mxu0 0.0
        %829 = vmatpush1.msra.mxu0 0.0
        %830 = vmatprep.subr.mxu0 0.0
        %831 = vmatpush1.msra.mxu0 0.0
        %832 = vmatprep.subr.mxu0 0.0
        %833 = vmatpush1.msra.mxu0 0.0
        %834 = vmatprep.subr.mxu0 0.0
        %835 = vmatpush1.msra.mxu0 0.0
        %836 = vmatprep.subr.mxu0 0.0
        %837 = vmatpush1.msra.mxu0 0.0
        %838 = vmatprep.subr.mxu0 0.0
        %839 = vmatpush1.msra.mxu0 0.0
        %840 = vmatprep.subr.mxu0 0.0
        %841 = vmatpush1.msra.mxu0 0.0
        %842 = vmatprep.subr.mxu0 0.0
        %843 = vmatpush1.msra.mxu0 0.0
        %844 = vmatprep.subr.mxu0 0.0
        %845 = vmatpush1.msra.mxu0 0.0
        %846 = vmatprep.subr.mxu0 0.0
        %847 = vmatpush1.msra.mxu0 0.0
        %848 = vmatprep.subr.mxu0 0.0
        %849 = vmatpush1.msra.mxu0 0.0
        %850 = vmatprep.subr.mxu0 0.0
        %851 = vmatpush1.msra.mxu0 0.0
        %852 = vmatprep.subr.mxu0 0.0
        %853 = vmatpush1.msra.mxu0 0.0
        %854 = vmatprep.subr.mxu0 0.0
        %855 = vmatpush1.msra.mxu0 0.0
        %856 = vmatprep.subr.mxu0 0.0
        %857 = vmatpush1.msra.mxu0 0.0
        %858 = vmatprep.subr.mxu0 0.0
        %859 = vmatpush1.msra.mxu0 0.0
        %860 = vmatprep.subr.mxu0 0.0
        %861 = vmatpush1.msra.mxu0 0.0
        %862 = vmatprep.subr.mxu0 0.0
        %863 = vmatpush1.msra.mxu0 0.0
        %864 = vmatprep.subr.mxu0 0.0
        %865 = vmatpush1.msra.mxu0 0.0
        %866 = vmatprep.subr.mxu0 0.0
        %867 = vmatpush1.msra.mxu0 0.0
        %868 = vmatprep.subr.mxu0 0.0
        %869 = vmatpush1.msra.mxu0 0.0
        %870 = vmatprep.subr.mxu0 0.0
        %871 = vmatpush1.msra.mxu0 0.0
        %872 = vmatprep.subr.mxu0 0.0
        %873 = vmatpush1.msra.mxu0 0.0
        %874 = vmatprep.subr.mxu0 0.0
        %875 = vmatpush1.msra.mxu0 0.0
        %876 = vmatprep.subr.mxu0 0.0
        %877 = vmatpush1.msra.mxu0 0.0
        %878 = vmatprep.subr.mxu0 0.0
        %879 = vmatpush1.msra.mxu0 0.0
        %880 = vmatprep.mubr.f32.mxu0 0.0
        %881 = vmatmul.mubr.f32.gmra.mrb[0].mxu0 %v789
        %v882 = vpop.f32.mrb[0].mxu0
        %v883 = vadd.f32 0.0, %v882
        %v884 = vpop.f32.mrb[0].mxu0
        %885 = vmatprep.mubr.f32.mxu0 0.0
        %886 = vmatmul.mubr.f32.gmra.mrb[0].mxu0 %v792
        %v887 = vpop.f32.mrb[0].mxu0
        %v888 = vadd.f32 0.0, %v887
        %v889 = vpop.f32.mrb[0].mxu0
        %890 = vmatprep.mubr.f32.mxu0 0.0
        %891 = vmatmul.mubr.f32.gmra.mrb[0].mxu0 %v795
        %v892 = vpop.f32.mrb[0].mxu0
        %v893 = vadd.f32 0.0, %v892
        %v894 = vpop.f32.mrb[0].mxu0
        %895 = vmatprep.mubr.f32.mxu0 0.0
        %896 = vmatmul.mubr.f32.gmra.mrb[0].mxu0 %v798
        %v897 = vpop.f32.mrb[0].mxu0
        %v898 = vadd.f32 0.0, %v897
        %v899 = vpop.f32.mrb[0].mxu0
        %900 = vmatprep.mubr.f32.mxu0 0.0
        %901 = vmatmul.mubr.f32.gmra.mrb[0].mxu0 %v801
        %v902 = vpop.f32.mrb[0].mxu0
        %v903 = vadd.f32 0.0, %v902
        %v904 = vpop.f32.mrb[0].mxu0
        %905 = vmatprep.mubr.f32.mxu0 0.0
        %906 = vmatmul.mubr.f32.gmra.mrb[0].mxu0 %v804
        %v907 = vpop.f32.mrb[0].mxu0
        %v908 = vadd.f32 0.0, %v907
        %v909 = vpop.f32.mrb[0].mxu0
        %910 = vmatprep.mubr.f32.mxu0 0.0
        %911 = vmatmul.mubr.f32.gmra.mrb[0].mxu0 %v807
        %v912 = vpop.f32.mrb[0].mxu0
        %v913 = vadd.f32 0.0, %v912
        %v914 = vpop.f32.mrb[0].mxu0
        %915 = vmatprep.mubr.f32.mxu0 0.0
        %916 = vmatmul.mubr.f32.gmra.mrb[0].mxu0 %v810
        %v917 = vpop.f32.mrb[0].mxu0
        %v918 = vadd.f32 0.0, %v917
        %v919 = vpop.f32.mrb[0].mxu0
        %920 = vdwg.mxu0
        %v921 = vld [vmem:[%s3] sm:$0x1]
        %v923 = vlaneseq
        %v924 = vshrl.u32 %v923, 7
        %v925 = vsub.s32 0, %v924
        %v926 = vrot.slane %v921, %v925
        %v928 = vmul.f32 %v883, %v926
        %v929 = vmul.f32 %v888, %v926
        %v930 = vmul.f32 %v893, %v926
        %v931 = vmul.f32 %v898, %v926
        %v932 = vmul.f32 %v903, %v926
        %v933 = vmul.f32 %v908, %v926
        %v934 = vmul.f32 %v913, %v926
        %v935 = vmul.f32 %v918, %v926
        %v936 = vld [vmem:[%s4] sm:$0x1]
        %v938 = vlaneseq
        %v939 = vshrl.u32 %v938, 7
        %v940 = vsub.s32 0, %v939
        %v941 = vrot.slane %v936, %v940
        %v943 = vadd.f32 %v928, %v941
        %v944 = vadd.f32 %v929, %v941
        %v945 = vadd.f32 %v930, %v941
        %v946 = vadd.f32 %v931, %v941
        %v947 = vadd.f32 %v932, %v941
        %v948 = vadd.f32 %v933, %v941
        %v949 = vadd.f32 %v934, %v941
        %v950 = vadd.f32 %v935, %v941
        %v951 = vmax.f32 %v943, 0.0
        %v952 = vmax.f32 %v944, 0.0
        %v953 = vmax.f32 %v945, 0.0
        %v954 = vmax.f32 %v946, 0.0
        %v955 = vmax.f32 %v947, 0.0
        %v956 = vmax.f32 %v948, 0.0
        %v957 = vmax.f32 %v949, 0.0
        %v958 = vmax.f32 %v950, 0.0
        %959 = vst [vmem:[#allocation3] sm:$0xff] 0.0
        %960 = vst [vmem:[#allocation3 + $0x8] sm:$0x3] 0.0
        %961 = vst [vmem:[#allocation3 + $0x10] sm:$0xff] 0.0
        %962 = vst [vmem:[#allocation3 + $0x18] sm:$0x3] 0.0
        %963 = vst [vmem:[#allocation3 + $0x20] sm:$0xff] 0.0
        %964 = vst [vmem:[#allocation3 + $0x28] sm:$0x3] 0.0
        %965 = vst [vmem:[#allocation3 + $0x30] sm:$0xff] 0.0
        %966 = vst [vmem:[#allocation3 + $0x38] sm:$0x3] 0.0
        %967 = vst [vmem:[#allocation3 + $0x40] sm:$0xff] 0.0
        %968 = vst [vmem:[#allocation3 + $0x48] sm:$0x3] 0.0
        %969 = vst [vmem:[#allocation3 + $0x50] sm:$0xff] 0.0
        %970 = vst [vmem:[#allocation3 + $0x58] sm:$0x3] 0.0
        %971 = vst [vmem:[#allocation3 + $0x60] sm:$0xff] 0.0
        %972 = vst [vmem:[#allocation3 + $0x68] sm:$0x3] 0.0
        %973 = vst [vmem:[#allocation3 + $0x70] sm:$0xff] 0.0
        %974 = vst [vmem:[#allocation3 + $0x78] sm:$0x3] 0.0
        %975 = vst [vmem:[#allocation3 + $0x80] sm:$0xff] 0.0
        %976 = vst [vmem:[#allocation3 + $0x88] sm:$0x3] 0.0
        %977 = vst [vmem:[#allocation3 + $0x90] sm:$0xff] 0.0
        %978 = vst [vmem:[#allocation3 + $0x98] sm:$0x3] 0.0
        %s979 = scalar_lea.vmem [#allocation3], 16
        %980 = vst [vmem:[%s979 + $0x1] sm:$0xff] %v951
        %981 = vst [vmem:[%s979 + $0x11] sm:$0xff] %v952
        %982 = vst [vmem:[%s979 + $0x21] sm:$0xff] %v953
        %983 = vst [vmem:[%s979 + $0x31] sm:$0xff] %v954
        %984 = vst [vmem:[%s979 + $0x41] sm:$0xff] %v955
        %985 = vst [vmem:[%s979 + $0x51] sm:$0xff] %v956
        %986 = vst [vmem:[%s979 + $0x61] sm:$0xff] %v957
        %987 = vst [vmem:[%s979 + $0x71] sm:$0xff] %v958
        %v988 = vld [vmem:[#allocation3] sm:$0xff]
        %v989 = vld [vmem:[#allocation3 + $0x10] sm:$0xff]
        %v990 = vld [vmem:[#allocation3 + $0x20] sm:$0xff]
        %v991 = vld [vmem:[#allocation3 + $0x30] sm:$0xff]
        %v992 = vld [vmem:[#allocation3 + $0x40] sm:$0xff]
        %v993 = vld [vmem:[#allocation3 + $0x50] sm:$0xff]
        %v994 = vld [vmem:[#allocation3 + $0x60] sm:$0xff]
        %v995 = vld [vmem:[#allocation3 + $0x70] sm:$0xff]
        %v996 = vld [vmem:[#allocation4] sm:$0xff]
        %v997 = vld [vmem:[#allocation4 + $0x8] sm:$0xff]
        %v998 = vld [vmem:[#allocation4 + $0x10] sm:$0xff]
        %v999 = vld [vmem:[#allocation4 + $0x18] sm:$0xff]
        %v1000 = vld [vmem:[#allocation4 + $0x20] sm:$0xff]
        %v1001 = vld [vmem:[#allocation4 + $0x28] sm:$0xff]
        %v1002 = vld [vmem:[#allocation4 + $0x30] sm:$0xff]
        %v1003 = vld [vmem:[#allocation4 + $0x38] sm:$0xff]
        %v1004 = vld [vmem:[#allocation4 + $0x40] sm:$0xff]
        %v1005 = vld [vmem:[#allocation4 + $0x48] sm:$0xff]
        %v1006 = vld [vmem:[#allocation4 + $0x50] sm:$0xff]
        %v1007 = vld [vmem:[#allocation4 + $0x58] sm:$0xff]
        %v1008 = vld [vmem:[#allocation4 + $0x60] sm:$0xff]
        %v1009 = vld [vmem:[#allocation4 + $0x68] sm:$0xff]
        %v1010 = vld [vmem:[#allocation4 + $0x70] sm:$0xff]
        %v1011 = vld [vmem:[#allocation4 + $0x78] sm:$0xff]
        %v1012 = vld [vmem:[#allocation3 + $0x1] sm:$0xff]
        %v1013 = vld [vmem:[#allocation3 + $0x11] sm:$0xff]
        %v1014 = vld [vmem:[#allocation3 + $0x21] sm:$0xff]
        %v1015 = vld [vmem:[#allocation3 + $0x31] sm:$0xff]
        %v1016 = vld [vmem:[#allocation3 + $0x41] sm:$0xff]
        %v1017 = vld [vmem:[#allocation3 + $0x51] sm:$0xff]
        %v1018 = vld [vmem:[#allocation3 + $0x61] sm:$0xff]
        %v1019 = vld [vmem:[#allocation3 + $0x71] sm:$0xff]
        %s1020 = scalar_lea.vmem [#allocation4], 128
        %v1021 = vld [vmem:[%s1020] sm:$0xff]
        %v1022 = vld [vmem:[%s1020 + $0x8] sm:$0xff]
        %v1023 = vld [vmem:[%s1020 + $0x10] sm:$0xff]
        %v1024 = vld [vmem:[%s1020 + $0x18] sm:$0xff]
        %v1025 = vld [vmem:[%s1020 + $0x20] sm:$0xff]
        %v1026 = vld [vmem:[%s1020 + $0x28] sm:$0xff]
        %v1027 = vld [vmem:[%s1020 + $0x30] sm:$0xff]
        %v1028 = vld [vmem:[%s1020 + $0x38] sm:$0xff]
        %v1029 = vld [vmem:[%s1020 + $0x40] sm:$0xff]
        %v1030 = vld [vmem:[%s1020 + $0x48] sm:$0xff]
        %v1031 = vld [vmem:[%s1020 + $0x50] sm:$0xff]
        %v1032 = vld [vmem:[%s1020 + $0x58] sm:$0xff]
        %v1033 = vld [vmem:[%s1020 + $0x60] sm:$0xff]
        %v1034 = vld [vmem:[%s1020 + $0x68] sm:$0xff]
        %v1035 = vld [vmem:[%s1020 + $0x70] sm:$0xff]
        %v1036 = vld [vmem:[%s1020 + $0x78] sm:$0xff]
        %1037 = vmatprep.subr.mxu0 0.0
        %1038 = vmatpush1.msra.mxu0 %v1021
        %1039 = vmatprep.subr.mxu0 0.0
        %1040 = vmatpush1.msra.mxu0 %v1022
        %1041 = vmatprep.subr.mxu0 0.0
        %1042 = vmatpush1.msra.mxu0 %v1023
        %1043 = vmatprep.subr.mxu0 0.0
        %1044 = vmatpush1.msra.mxu0 %v1024
        %1045 = vmatprep.subr.mxu0 0.0
        %1046 = vmatpush1.msra.mxu0 %v1025
        %1047 = vmatprep.subr.mxu0 0.0
        %1048 = vmatpush1.msra.mxu0 %v1026
        %1049 = vmatprep.subr.mxu0 0.0
        %1050 = vmatpush1.msra.mxu0 %v1027
        %1051 = vmatprep.subr.mxu0 0.0
        %1052 = vmatpush1.msra.mxu0 %v1028
        %1053 = vmatprep.subr.mxu0 0.0
        %1054 = vmatpush1.msra.mxu0 %v1029
        %1055 = vmatprep.subr.mxu0 0.0
        %1056 = vmatpush1.msra.mxu0 %v1030
        %1057 = vmatprep.subr.mxu0 0.0
        %1058 = vmatpush1.msra.mxu0 %v1031
        %1059 = vmatprep.subr.mxu0 0.0
        %1060 = vmatpush1.msra.mxu0 %v1032
        %1061 = vmatprep.subr.mxu0 0.0
        %1062 = vmatpush1.msra.mxu0 %v1033
        %1063 = vmatprep.subr.mxu0 0.0
        %1064 = vmatpush1.msra.mxu0 %v1034
        %1065 = vmatprep.subr.mxu0 0.0
        %1066 = vmatpush1.msra.mxu0 %v1035
        %1067 = vmatprep.subr.mxu0 0.0
        %1068 = vmatpush1.msra.mxu0 %v1036
        %1069 = vmatprep.subr.mxu0 0.0
        %1070 = vmatpush1.msra.mxu0 0.0
        %1071 = vmatprep.subr.mxu0 0.0
        %1072 = vmatpush1.msra.mxu0 0.0
        %1073 = vmatprep.subr.mxu0 0.0
        %1074 = vmatpush1.msra.mxu0 0.0
        %1075 = vmatprep.subr.mxu0 0.0
        %1076 = vmatpush1.msra.mxu0 0.0
        %1077 = vmatprep.subr.mxu0 0.0
        %1078 = vmatpush1.msra.mxu0 0.0
        %1079 = vmatprep.subr.mxu0 0.0
        %1080 = vmatpush1.msra.mxu0 0.0
        %1081 = vmatprep.subr.mxu0 0.0
        %1082 = vmatpush1.msra.mxu0 0.0
        %1083 = vmatprep.subr.mxu0 0.0
        %1084 = vmatpush1.msra.mxu0 0.0
        %1085 = vmatprep.subr.mxu0 0.0
        %1086 = vmatpush1.msra.mxu0 0.0
        %1087 = vmatprep.subr.mxu0 0.0
        %1088 = vmatpush1.msra.mxu0 0.0
        %1089 = vmatprep.subr.mxu0 0.0
        %1090 = vmatpush1.msra.mxu0 0.0
        %1091 = vmatprep.subr.mxu0 0.0
        %1092 = vmatpush1.msra.mxu0 0.0
        %1093 = vmatprep.subr.mxu0 0.0
        %1094 = vmatpush1.msra.mxu0 0.0
        %1095 = vmatprep.subr.mxu0 0.0
        %1096 = vmatpush1.msra.mxu0 0.0
        %1097 = vmatprep.subr.mxu0 0.0
        %1098 = vmatpush1.msra.mxu0 0.0
        %1099 = vmatprep.subr.mxu0 0.0
        %1100 = vmatpush1.msra.mxu0 0.0
        %1101 = vmatprep.mubr.f32.mxu0 0.0
        %1102 = vmatmul.mubr.f32.gmra.mrb[0].mxu0 %v1012
        %v1103 = vpop.f32.mrb[0].mxu0
        %v1104 = vadd.f32 0.0, %v1103
        %v1105 = vpop.f32.mrb[0].mxu0
        %1106 = vmatprep.mubr.f32.mxu0 0.0
        %1107 = vmatmul.mubr.f32.gmra.mrb[0].mxu0 %v1013
        %v1108 = vpop.f32.mrb[0].mxu0
        %v1109 = vadd.f32 0.0, %v1108
        %v1110 = vpop.f32.mrb[0].mxu0
        %1111 = vmatprep.mubr.f32.mxu0 0.0
        %1112 = vmatmul.mubr.f32.gmra.mrb[0].mxu0 %v1014
        %v1113 = vpop.f32.mrb[0].mxu0
        %v1114 = vadd.f32 0.0, %v1113
        %v1115 = vpop.f32.mrb[0].mxu0
        %1116 = vmatprep.mubr.f32.mxu0 0.0
        %1117 = vmatmul.mubr.f32.gmra.mrb[0].mxu0 %v1015
        %v1118 = vpop.f32.mrb[0].mxu0
        %v1119 = vadd.f32 0.0, %v1118
        %v1120 = vpop.f32.mrb[0].mxu0
        %1121 = vmatprep.mubr.f32.mxu0 0.0
        %1122 = vmatmul.mubr.f32.gmra.mrb[0].mxu0 %v1016
        %v1123 = vpop.f32.mrb[0].mxu0
        %v1124 = vadd.f32 0.0, %v1123
        %v1125 = vpop.f32.mrb[0].mxu0
        %1126 = vmatprep.mubr.f32.mxu0 0.0
        %1127 = vmatmul.mubr.f32.gmra.mrb[0].mxu0 %v1017
        %v1128 = vpop.f32.mrb[0].mxu0
        %v1129 = vadd.f32 0.0, %v1128
        %v1130 = vpop.f32.mrb[0].mxu0
        %1131 = vmatprep.mubr.f32.mxu0 0.0
        %1132 = vmatmul.mubr.f32.gmra.mrb[0].mxu0 %v1018
        %v1133 = vpop.f32.mrb[0].mxu0
        %v1134 = vadd.f32 0.0, %v1133
        %v1135 = vpop.f32.mrb[0].mxu0
        %1136 = vmatprep.mubr.f32.mxu0 0.0
        %1137 = vmatmul.mubr.f32.gmra.mrb[0].mxu0 %v1019
        %v1138 = vpop.f32.mrb[0].mxu0
        %v1139 = vadd.f32 0.0, %v1138
        %v1140 = vpop.f32.mrb[0].mxu0
        %1141 = vdwg.mxu0
        %1142 = vmatprep.subr.mxu0 0.0
        %1143 = vmatpush1.msra.mxu0 %v996
        %1144 = vmatprep.subr.mxu0 0.0
        %1145 = vmatpush1.msra.mxu0 %v997
        %1146 = vmatprep.subr.mxu0 0.0
        %1147 = vmatpush1.msra.mxu0 %v998
        %1148 = vmatprep.subr.mxu0 0.0
        %1149 = vmatpush1.msra.mxu0 %v999
        %1150 = vmatprep.subr.mxu0 0.0
        %1151 = vmatpush1.msra.mxu0 %v1000
        %1152 = vmatprep.subr.mxu0 0.0
        %1153 = vmatpush1.msra.mxu0 %v1001
        %1154 = vmatprep.subr.mxu0 0.0
        %1155 = vmatpush1.msra.mxu0 %v1002
        %1156 = vmatprep.subr.mxu0 0.0
        %1157 = vmatpush1.msra.mxu0 %v1003
        %1158 = vmatprep.subr.mxu0 0.0
        %1159 = vmatpush1.msra.mxu0 %v1004
        %1160 = vmatprep.subr.mxu0 0.0
        %1161 = vmatpush1.msra.mxu0 %v1005
        %1162 = vmatprep.subr.mxu0 0.0
        %1163 = vmatpush1.msra.mxu0 %v1006
        %1164 = vmatprep.subr.mxu0 0.0
        %1165 = vmatpush1.msra.mxu0 %v1007
        %1166 = vmatprep.subr.mxu0 0.0
        %1167 = vmatpush1.msra.mxu0 %v1008
        %1168 = vmatprep.subr.mxu0 0.0
        %1169 = vmatpush1.msra.mxu0 %v1009
        %1170 = vmatprep.subr.mxu0 0.0
        %1171 = vmatpush1.msra.mxu0 %v1010
        %1172 = vmatprep.subr.mxu0 0.0
        %1173 = vmatpush1.msra.mxu0 %v1011
        %1174 = vmatprep.subr.mxu0 0.0
        %1175 = vmatpush1.msra.mxu0 0.0
        %1176 = vmatprep.subr.mxu0 0.0
        %1177 = vmatpush1.msra.mxu0 0.0
        %1178 = vmatprep.subr.mxu0 0.0
        %1179 = vmatpush1.msra.mxu0 0.0
        %1180 = vmatprep.subr.mxu0 0.0
        %1181 = vmatpush1.msra.mxu0 0.0
        %1182 = vmatprep.subr.mxu0 0.0
        %1183 = vmatpush1.msra.mxu0 0.0
        %1184 = vmatprep.subr.mxu0 0.0
        %1185 = vmatpush1.msra.mxu0 0.0
        %1186 = vmatprep.subr.mxu0 0.0
        %1187 = vmatpush1.msra.mxu0 0.0
        %1188 = vmatprep.subr.mxu0 0.0
        %1189 = vmatpush1.msra.mxu0 0.0
        %1190 = vmatprep.subr.mxu0 0.0
        %1191 = vmatpush1.msra.mxu0 0.0
        %1192 = vmatprep.subr.mxu0 0.0
        %1193 = vmatpush1.msra.mxu0 0.0
        %1194 = vmatprep.subr.mxu0 0.0
        %1195 = vmatpush1.msra.mxu0 0.0
        %1196 = vmatprep.subr.mxu0 0.0
        %1197 = vmatpush1.msra.mxu0 0.0
        %1198 = vmatprep.subr.mxu0 0.0
        %1199 = vmatpush1.msra.mxu0 0.0
        %1200 = vmatprep.subr.mxu0 0.0
        %1201 = vmatpush1.msra.mxu0 0.0
        %1202 = vmatprep.subr.mxu0 0.0
        %1203 = vmatpush1.msra.mxu0 0.0
        %1204 = vmatprep.subr.mxu0 0.0
        %1205 = vmatpush1.msra.mxu0 0.0
        %1206 = vmatprep.mubr.f32.mxu0 0.0
        %1207 = vmatmul.mubr.f32.gmra.mrb[0].mxu0 %v988
        %v1208 = vpop.f32.mrb[0].mxu0
        %v1209 = vadd.f32 %v1104, %v1208
        %v1210 = vpop.f32.mrb[0].mxu0
        %1211 = vmatprep.mubr.f32.mxu0 0.0
        %1212 = vmatmul.mubr.f32.gmra.mrb[0].mxu0 %v989
        %v1213 = vpop.f32.mrb[0].mxu0
        %v1214 = vadd.f32 %v1109, %v1213
        %v1215 = vpop.f32.mrb[0].mxu0
        %1216 = vmatprep.mubr.f32.mxu0 0.0
        %1217 = vmatmul.mubr.f32.gmra.mrb[0].mxu0 %v990
        %v1218 = vpop.f32.mrb[0].mxu0
        %v1219 = vadd.f32 %v1114, %v1218
        %v1220 = vpop.f32.mrb[0].mxu0
        %1221 = vmatprep.mubr.f32.mxu0 0.0
        %1222 = vmatmul.mubr.f32.gmra.mrb[0].mxu0 %v991
        %v1223 = vpop.f32.mrb[0].mxu0
        %v1224 = vadd.f32 %v1119, %v1223
        %v1225 = vpop.f32.mrb[0].mxu0
        %1226 = vmatprep.mubr.f32.mxu0 0.0
        %1227 = vmatmul.mubr.f32.gmra.mrb[0].mxu0 %v992
        %v1228 = vpop.f32.mrb[0].mxu0
        %v1229 = vadd.f32 %v1124, %v1228
        %v1230 = vpop.f32.mrb[0].mxu0
        %1231 = vmatprep.mubr.f32.mxu0 0.0
        %1232 = vmatmul.mubr.f32.gmra.mrb[0].mxu0 %v993
        %v1233 = vpop.f32.mrb[0].mxu0
        %v1234 = vadd.f32 %v1129, %v1233
        %v1235 = vpop.f32.mrb[0].mxu0
        %1236 = vmatprep.mubr.f32.mxu0 0.0
        %1237 = vmatmul.mubr.f32.gmra.mrb[0].mxu0 %v994
        %v1238 = vpop.f32.mrb[0].mxu0
        %v1239 = vadd.f32 %v1134, %v1238
        %v1240 = vpop.f32.mrb[0].mxu0
        %1241 = vmatprep.mubr.f32.mxu0 0.0
        %1242 = vmatmul.mubr.f32.gmra.mrb[0].mxu0 %v995
        %v1243 = vpop.f32.mrb[0].mxu0
        %v1244 = vadd.f32 %v1139, %v1243
        %v1245 = vpop.f32.mrb[0].mxu0
        %1246 = vdwg.mxu0
        %v1247 = vld [vmem:[#allocation3 + $0x2] sm:$0xff]
        %v1248 = vld [vmem:[#allocation3 + $0x12] sm:$0xff]
        %v1249 = vld [vmem:[#allocation3 + $0x22] sm:$0xff]
        %v1250 = vld [vmem:[#allocation3 + $0x32] sm:$0xff]
        %v1251 = vld [vmem:[#allocation3 + $0x42] sm:$0xff]
        %v1252 = vld [vmem:[#allocation3 + $0x52] sm:$0xff]
        %v1253 = vld [vmem:[#allocation3 + $0x62] sm:$0xff]
        %v1254 = vld [vmem:[#allocation3 + $0x72] sm:$0xff]
        %s1255 = scalar_lea.vmem [#allocation4], 256
        %v1256 = vld [vmem:[%s1255] sm:$0xff]
        %v1257 = vld [vmem:[%s1255 + $0x8] sm:$0xff]
        %v1258 = vld [vmem:[%s1255 + $0x10] sm:$0xff]
        %v1259 = vld [vmem:[%s1255 + $0x18] sm:$0xff]
        %v1260 = vld [vmem:[%s1255 + $0x20] sm:$0xff]
        %v1261 = vld [vmem:[%s1255 + $0x28] sm:$0xff]
        %v1262 = vld [vmem:[%s1255 + $0x30] sm:$0xff]
        %v1263 = vld [vmem:[%s1255 + $0x38] sm:$0xff]
        %v1264 = vld [vmem:[%s1255 + $0x40] sm:$0xff]
        %v1265 = vld [vmem:[%s1255 + $0x48] sm:$0xff]
        %v1266 = vld [vmem:[%s1255 + $0x50] sm:$0xff]
        %v1267 = vld [vmem:[%s1255 + $0x58] sm:$0xff]
        %v1268 = vld [vmem:[%s1255 + $0x60] sm:$0xff]
        %v1269 = vld [vmem:[%s1255 + $0x68] sm:$0xff]
        %v1270 = vld [vmem:[%s1255 + $0x70] sm:$0xff]
        %v1271 = vld [vmem:[%s1255 + $0x78] sm:$0xff]
        %1272 = vmatprep.subr.mxu0 0.0
        %1273 = vmatpush1.msra.mxu0 %v1256
        %1274 = vmatprep.subr.mxu0 0.0
        %1275 = vmatpush1.msra.mxu0 %v1257
        %1276 = vmatprep.subr.mxu0 0.0
        %1277 = vmatpush1.msra.mxu0 %v1258
        %1278 = vmatprep.subr.mxu0 0.0
        %1279 = vmatpush1.msra.mxu0 %v1259
        %1280 = vmatprep.subr.mxu0 0.0
        %1281 = vmatpush1.msra.mxu0 %v1260
        %1282 = vmatprep.subr.mxu0 0.0
        %1283 = vmatpush1.msra.mxu0 %v1261
        %1284 = vmatprep.subr.mxu0 0.0
        %1285 = vmatpush1.msra.mxu0 %v1262
        %1286 = vmatprep.subr.mxu0 0.0
        %1287 = vmatpush1.msra.mxu0 %v1263
        %1288 = vmatprep.subr.mxu0 0.0
        %1289 = vmatpush1.msra.mxu0 %v1264
        %1290 = vmatprep.subr.mxu0 0.0
        %1291 = vmatpush1.msra.mxu0 %v1265
        %1292 = vmatprep.subr.mxu0 0.0
        %1293 = vmatpush1.msra.mxu0 %v1266
        %1294 = vmatprep.subr.mxu0 0.0
        %1295 = vmatpush1.msra.mxu0 %v1267
        %1296 = vmatprep.subr.mxu0 0.0
        %1297 = vmatpush1.msra.mxu0 %v1268
        %1298 = vmatprep.subr.mxu0 0.0
        %1299 = vmatpush1.msra.mxu0 %v1269
        %1300 = vmatprep.subr.mxu0 0.0
        %1301 = vmatpush1.msra.mxu0 %v1270
        %1302 = vmatprep.subr.mxu0 0.0
        %1303 = vmatpush1.msra.mxu0 %v1271
        %1304 = vmatprep.subr.mxu0 0.0
        %1305 = vmatpush1.msra.mxu0 0.0
        %1306 = vmatprep.subr.mxu0 0.0
        %1307 = vmatpush1.msra.mxu0 0.0
        %1308 = vmatprep.subr.mxu0 0.0
        %1309 = vmatpush1.msra.mxu0 0.0
        %1310 = vmatprep.subr.mxu0 0.0
        %1311 = vmatpush1.msra.mxu0 0.0
        %1312 = vmatprep.subr.mxu0 0.0
        %1313 = vmatpush1.msra.mxu0 0.0
        %1314 = vmatprep.subr.mxu0 0.0
        %1315 = vmatpush1.msra.mxu0 0.0
        %1316 = vmatprep.subr.mxu0 0.0
        %1317 = vmatpush1.msra.mxu0 0.0
        %1318 = vmatprep.subr.mxu0 0.0
        %1319 = vmatpush1.msra.mxu0 0.0
        %1320 = vmatprep.subr.mxu0 0.0
        %1321 = vmatpush1.msra.mxu0 0.0
        %1322 = vmatprep.subr.mxu0 0.0
        %1323 = vmatpush1.msra.mxu0 0.0
        %1324 = vmatprep.subr.mxu0 0.0
        %1325 = vmatpush1.msra.mxu0 0.0
        %1326 = vmatprep.subr.mxu0 0.0
        %1327 = vmatpush1.msra.mxu0 0.0
        %1328 = vmatprep.subr.mxu0 0.0
        %1329 = vmatpush1.msra.mxu0 0.0
        %1330 = vmatprep.subr.mxu0 0.0
        %1331 = vmatpush1.msra.mxu0 0.0
        %1332 = vmatprep.subr.mxu0 0.0
        %1333 = vmatpush1.msra.mxu0 0.0
        %1334 = vmatprep.subr.mxu0 0.0
        %1335 = vmatpush1.msra.mxu0 0.0
        %1336 = vmatprep.mubr.f32.mxu0 0.0
        %1337 = vmatmul.mubr.f32.gmra.mrb[0].mxu0 %v1247
        %v1338 = vpop.f32.mrb[0].mxu0
        %v1339 = vadd.f32 0.0, %v1338
        %v1340 = vpop.f32.mrb[0].mxu0
        %1341 = vmatprep.mubr.f32.mxu0 0.0
        %1342 = vmatmul.mubr.f32.gmra.mrb[0].mxu0 %v1248
        %v1343 = vpop.f32.mrb[0].mxu0
        %v1344 = vadd.f32 0.0, %v1343
        %v1345 = vpop.f32.mrb[0].mxu0
        %1346 = vmatprep.mubr.f32.mxu0 0.0
        %1347 = vmatmul.mubr.f32.gmra.mrb[0].mxu0 %v1249
        %v1348 = vpop.f32.mrb[0].mxu0
        %v1349 = vadd.f32 0.0, %v1348
        %v1350 = vpop.f32.mrb[0].mxu0
        %1351 = vmatprep.mubr.f32.mxu0 0.0
        %1352 = vmatmul.mubr.f32.gmra.mrb[0].mxu0 %v1250
        %v1353 = vpop.f32.mrb[0].mxu0
        %v1354 = vadd.f32 0.0, %v1353
        %v1355 = vpop.f32.mrb[0].mxu0
        %1356 = vmatprep.mubr.f32.mxu0 0.0
        %1357 = vmatmul.mubr.f32.gmra.mrb[0].mxu0 %v1251
        %v1358 = vpop.f32.mrb[0].mxu0
        %v1359 = vadd.f32 0.0, %v1358
        %v1360 = vpop.f32.mrb[0].mxu0
        %1361 = vmatprep.mubr.f32.mxu0 0.0
        %1362 = vmatmul.mubr.f32.gmra.mrb[0].mxu0 %v1252
        %v1363 = vpop.f32.mrb[0].mxu0
        %v1364 = vadd.f32 0.0, %v1363
        %v1365 = vpop.f32.mrb[0].mxu0
        %1366 = vmatprep.mubr.f32.mxu0 0.0
        %1367 = vmatmul.mubr.f32.gmra.mrb[0].mxu0 %v1253
        %v1368 = vpop.f32.mrb[0].mxu0
        %v1369 = vadd.f32 0.0, %v1368
        %v1370 = vpop.f32.mrb[0].mxu0
        %1371 = vmatprep.mubr.f32.mxu0 0.0
        %1372 = vmatmul.mubr.f32.gmra.mrb[0].mxu0 %v1254
        %v1373 = vpop.f32.mrb[0].mxu0
        %v1374 = vadd.f32 0.0, %v1373
        %v1375 = vpop.f32.mrb[0].mxu0
        %1376 = vdwg.mxu0
        %v1377 = vadd.f32 %v1209, %v1339
        %v1378 = vadd.f32 %v1214, %v1344
        %v1379 = vadd.f32 %v1219, %v1349
        %v1380 = vadd.f32 %v1224, %v1354
        %v1381 = vadd.f32 %v1229, %v1359
        %v1382 = vadd.f32 %v1234, %v1364
        %v1383 = vadd.f32 %v1239, %v1369
        %v1384 = vadd.f32 %v1244, %v1374
        %v1385 = vld [vmem:[%s979] sm:$0xff]
        %v1386 = vld [vmem:[%s979 + $0x10] sm:$0xff]
        %v1387 = vld [vmem:[%s979 + $0x20] sm:$0xff]
        %v1388 = vld [vmem:[%s979 + $0x30] sm:$0xff]
        %v1389 = vld [vmem:[%s979 + $0x40] sm:$0xff]
        %v1390 = vld [vmem:[%s979 + $0x50] sm:$0xff]
        %v1391 = vld [vmem:[%s979 + $0x60] sm:$0xff]
        %v1392 = vld [vmem:[%s979 + $0x70] sm:$0xff]
        %s1393 = scalar_lea.vmem [#allocation4], 384
        %v1394 = vld [vmem:[%s1393] sm:$0xff]
        %v1395 = vld [vmem:[%s1393 + $0x8] sm:$0xff]
        %v1396 = vld [vmem:[%s1393 + $0x10] sm:$0xff]
        %v1397 = vld [vmem:[%s1393 + $0x18] sm:$0xff]
        %v1398 = vld [vmem:[%s1393 + $0x20] sm:$0xff]
        %v1399 = vld [vmem:[%s1393 + $0x28] sm:$0xff]
        %v1400 = vld [vmem:[%s1393 + $0x30] sm:$0xff]
        %v1401 = vld [vmem:[%s1393 + $0x38] sm:$0xff]
        %v1402 = vld [vmem:[%s1393 + $0x40] sm:$0xff]
        %v1403 = vld [vmem:[%s1393 + $0x48] sm:$0xff]
        %v1404 = vld [vmem:[%s1393 + $0x50] sm:$0xff]
        %v1405 = vld [vmem:[%s1393 + $0x58] sm:$0xff]
        %v1406 = vld [vmem:[%s1393 + $0x60] sm:$0xff]
        %v1407 = vld [vmem:[%s1393 + $0x68] sm:$0xff]
        %v1408 = vld [vmem:[%s1393 + $0x70] sm:$0xff]
        %v1409 = vld [vmem:[%s1393 + $0x78] sm:$0xff]
        %1410 = vmatprep.subr.mxu0 0.0
        %1411 = vmatpush1.msra.mxu0 %v1394
        %1412 = vmatprep.subr.mxu0 0.0
        %1413 = vmatpush1.msra.mxu0 %v1395
        %1414 = vmatprep.subr.mxu0 0.0
        %1415 = vmatpush1.msra.mxu0 %v1396
        %1416 = vmatprep.subr.mxu0 0.0
        %1417 = vmatpush1.msra.mxu0 %v1397
        %1418 = vmatprep.subr.mxu0 0.0
        %1419 = vmatpush1.msra.mxu0 %v1398
        %1420 = vmatprep.subr.mxu0 0.0
        %1421 = vmatpush1.msra.mxu0 %v1399
        %1422 = vmatprep.subr.mxu0 0.0
        %1423 = vmatpush1.msra.mxu0 %v1400
        %1424 = vmatprep.subr.mxu0 0.0
        %1425 = vmatpush1.msra.mxu0 %v1401
        %1426 = vmatprep.subr.mxu0 0.0
        %1427 = vmatpush1.msra.mxu0 %v1402
        %1428 = vmatprep.subr.mxu0 0.0
        %1429 = vmatpush1.msra.mxu0 %v1403
        %1430 = vmatprep.subr.mxu0 0.0
        %1431 = vmatpush1.msra.mxu0 %v1404
        %1432 = vmatprep.subr.mxu0 0.0
        %1433 = vmatpush1.msra.mxu0 %v1405
        %1434 = vmatprep.subr.mxu0 0.0
        %1435 = vmatpush1.msra.mxu0 %v1406
        %1436 = vmatprep.subr.mxu0 0.0
        %1437 = vmatpush1.msra.mxu0 %v1407
        %1438 = vmatprep.subr.mxu0 0.0
        %1439 = vmatpush1.msra.mxu0 %v1408
        %1440 = vmatprep.subr.mxu0 0.0
        %1441 = vmatpush1.msra.mxu0 %v1409
        %1442 = vmatprep.subr.mxu0 0.0
        %1443 = vmatpush1.msra.mxu0 0.0
        %1444 = vmatprep.subr.mxu0 0.0
        %1445 = vmatpush1.msra.mxu0 0.0
        %1446 = vmatprep.subr.mxu0 0.0
        %1447 = vmatpush1.msra.mxu0 0.0
        %1448 = vmatprep.subr.mxu0 0.0
        %1449 = vmatpush1.msra.mxu0 0.0
        %1450 = vmatprep.subr.mxu0 0.0
        %1451 = vmatpush1.msra.mxu0 0.0
        %1452 = vmatprep.subr.mxu0 0.0
        %1453 = vmatpush1.msra.mxu0 0.0
        %1454 = vmatprep.subr.mxu0 0.0
        %1455 = vmatpush1.msra.mxu0 0.0
        %1456 = vmatprep.subr.mxu0 0.0
        %1457 = vmatpush1.msra.mxu0 0.0
        %1458 = vmatprep.subr.mxu0 0.0
        %1459 = vmatpush1.msra.mxu0 0.0
        %1460 = vmatprep.subr.mxu0 0.0
        %1461 = vmatpush1.msra.mxu0 0.0
        %1462 = vmatprep.subr.mxu0 0.0
        %1463 = vmatpush1.msra.mxu0 0.0
        %1464 = vmatprep.subr.mxu0 0.0
        %1465 = vmatpush1.msra.mxu0 0.0
        %1466 = vmatprep.subr.mxu0 0.0
        %1467 = vmatpush1.msra.mxu0 0.0
        %1468 = vmatprep.subr.mxu0 0.0
        %1469 = vmatpush1.msra.mxu0 0.0
        %1470 = vmatprep.subr.mxu0 0.0
        %1471 = vmatpush1.msra.mxu0 0.0
        %1472 = vmatprep.subr.mxu0 0.0
        %1473 = vmatpush1.msra.mxu0 0.0
        %1474 = vmatprep.mubr.f32.mxu0 0.0
        %1475 = vmatmul.mubr.f32.gmra.mrb[0].mxu0 %v1385
        %v1476 = vpop.f32.mrb[0].mxu0
        %v1477 = vadd.f32 0.0, %v1476
        %v1478 = vpop.f32.mrb[0].mxu0
        %1479 = vmatprep.mubr.f32.mxu0 0.0
        %1480 = vmatmul.mubr.f32.gmra.mrb[0].mxu0 %v1386
        %v1481 = vpop.f32.mrb[0].mxu0
        %v1482 = vadd.f32 0.0, %v1481
        %v1483 = vpop.f32.mrb[0].mxu0
        %1484 = vmatprep.mubr.f32.mxu0 0.0
        %1485 = vmatmul.mubr.f32.gmra.mrb[0].mxu0 %v1387
        %v1486 = vpop.f32.mrb[0].mxu0
        %v1487 = vadd.f32 0.0, %v1486
        %v1488 = vpop.f32.mrb[0].mxu0
        %1489 = vmatprep.mubr.f32.mxu0 0.0
        %1490 = vmatmul.mubr.f32.gmra.mrb[0].mxu0 %v1388
        %v1491 = vpop.f32.mrb[0].mxu0
        %v1492 = vadd.f32 0.0, %v1491
        %v1493 = vpop.f32.mrb[0].mxu0
        %1494 = vmatprep.mubr.f32.mxu0 0.0
        %1495 = vmatmul.mubr.f32.gmra.mrb[0].mxu0 %v1389
        %v1496 = vpop.f32.mrb[0].mxu0
        %v1497 = vadd.f32 0.0, %v1496
        %v1498 = vpop.f32.mrb[0].mxu0
        %1499 = vmatprep.mubr.f32.mxu0 0.0
        %1500 = vmatmul.mubr.f32.gmra.mrb[0].mxu0 %v1390
        %v1501 = vpop.f32.mrb[0].mxu0
        %v1502 = vadd.f32 0.0, %v1501
        %v1503 = vpop.f32.mrb[0].mxu0
        %1504 = vmatprep.mubr.f32.mxu0 0.0
        %1505 = vmatmul.mubr.f32.gmra.mrb[0].mxu0 %v1391
        %v1506 = vpop.f32.mrb[0].mxu0
        %v1507 = vadd.f32 0.0, %v1506
        %v1508 = vpop.f32.mrb[0].mxu0
        %1509 = vmatprep.mubr.f32.mxu0 0.0
        %1510 = vmatmul.mubr.f32.gmra.mrb[0].mxu0 %v1392
        %v1511 = vpop.f32.mrb[0].mxu0
        %v1512 = vadd.f32 0.0, %v1511
        %v1513 = vpop.f32.mrb[0].mxu0
        %1514 = vdwg.mxu0
        %v1515 = vadd.f32 %v1377, %v1477
        %v1516 = vadd.f32 %v1378, %v1482
        %v1517 = vadd.f32 %v1379, %v1487
        %v1518 = vadd.f32 %v1380, %v1492
        %v1519 = vadd.f32 %v1381, %v1497
        %v1520 = vadd.f32 %v1382, %v1502
        %v1521 = vadd.f32 %v1383, %v1507
        %v1522 = vadd.f32 %v1384, %v1512
        %v1523 = vld [vmem:[%s979 + $0x1] sm:$0xff]
        %v1524 = vld [vmem:[%s979 + $0x11] sm:$0xff]
        %v1525 = vld [vmem:[%s979 + $0x21] sm:$0xff]
        %v1526 = vld [vmem:[%s979 + $0x31] sm:$0xff]
        %v1527 = vld [vmem:[%s979 + $0x41] sm:$0xff]
        %v1528 = vld [vmem:[%s979 + $0x51] sm:$0xff]
        %v1529 = vld [vmem:[%s979 + $0x61] sm:$0xff]
        %v1530 = vld [vmem:[%s979 + $0x71] sm:$0xff]
        %s1531 = scalar_lea.vmem [#allocation4], 512
        %v1532 = vld [vmem:[%s1531] sm:$0xff]
        %v1533 = vld [vmem:[%s1531 + $0x8] sm:$0xff]
        %v1534 = vld [vmem:[%s1531 + $0x10] sm:$0xff]
        %v1535 = vld [vmem:[%s1531 + $0x18] sm:$0xff]
        %v1536 = vld [vmem:[%s1531 + $0x20] sm:$0xff]
        %v1537 = vld [vmem:[%s1531 + $0x28] sm:$0xff]
        %v1538 = vld [vmem:[%s1531 + $0x30] sm:$0xff]
        %v1539 = vld [vmem:[%s1531 + $0x38] sm:$0xff]
        %v1540 = vld [vmem:[%s1531 + $0x40] sm:$0xff]
        %v1541 = vld [vmem:[%s1531 + $0x48] sm:$0xff]
        %v1542 = vld [vmem:[%s1531 + $0x50] sm:$0xff]
        %v1543 = vld [vmem:[%s1531 + $0x58] sm:$0xff]
        %v1544 = vld [vmem:[%s1531 + $0x60] sm:$0xff]
        %v1545 = vld [vmem:[%s1531 + $0x68] sm:$0xff]
        %v1546 = vld [vmem:[%s1531 + $0x70] sm:$0xff]
        %v1547 = vld [vmem:[%s1531 + $0x78] sm:$0xff]
        %1548 = vmatprep.subr.mxu0 0.0
        %1549 = vmatpush1.msra.mxu0 %v1532
        %1550 = vmatprep.subr.mxu0 0.0
        %1551 = vmatpush1.msra.mxu0 %v1533
        %1552 = vmatprep.subr.mxu0 0.0
        %1553 = vmatpush1.msra.mxu0 %v1534
        %1554 = vmatprep.subr.mxu0 0.0
        %1555 = vmatpush1.msra.mxu0 %v1535
        %1556 = vmatprep.subr.mxu0 0.0
        %1557 = vmatpush1.msra.mxu0 %v1536
        %1558 = vmatprep.subr.mxu0 0.0
        %1559 = vmatpush1.msra.mxu0 %v1537
        %1560 = vmatprep.subr.mxu0 0.0
        %1561 = vmatpush1.msra.mxu0 %v1538
        %1562 = vmatprep.subr.mxu0 0.0
        %1563 = vmatpush1.msra.mxu0 %v1539
        %1564 = vmatprep.subr.mxu0 0.0
        %1565 = vmatpush1.msra.mxu0 %v1540
        %1566 = vmatprep.subr.mxu0 0.0
        %1567 = vmatpush1.msra.mxu0 %v1541
        %1568 = vmatprep.subr.mxu0 0.0
        %1569 = vmatpush1.msra.mxu0 %v1542
        %1570 = vmatprep.subr.mxu0 0.0
        %1571 = vmatpush1.msra.mxu0 %v1543
        %1572 = vmatprep.subr.mxu0 0.0
        %1573 = vmatpush1.msra.mxu0 %v1544
        %1574 = vmatprep.subr.mxu0 0.0
        %1575 = vmatpush1.msra.mxu0 %v1545
        %1576 = vmatprep.subr.mxu0 0.0
        %1577 = vmatpush1.msra.mxu0 %v1546
        %1578 = vmatprep.subr.mxu0 0.0
        %1579 = vmatpush1.msra.mxu0 %v1547
        %1580 = vmatprep.subr.mxu0 0.0
        %1581 = vmatpush1.msra.mxu0 0.0
        %1582 = vmatprep.subr.mxu0 0.0
        %1583 = vmatpush1.msra.mxu0 0.0
        %1584 = vmatprep.subr.mxu0 0.0
        %1585 = vmatpush1.msra.mxu0 0.0
        %1586 = vmatprep.subr.mxu0 0.0
        %1587 = vmatpush1.msra.mxu0 0.0
        %1588 = vmatprep.subr.mxu0 0.0
        %1589 = vmatpush1.msra.mxu0 0.0
        %1590 = vmatprep.subr.mxu0 0.0
        %1591 = vmatpush1.msra.mxu0 0.0
        %1592 = vmatprep.subr.mxu0 0.0
        %1593 = vmatpush1.msra.mxu0 0.0
        %1594 = vmatprep.subr.mxu0 0.0
        %1595 = vmatpush1.msra.mxu0 0.0
        %1596 = vmatprep.subr.mxu0 0.0
        %1597 = vmatpush1.msra.mxu0 0.0
        %1598 = vmatprep.subr.mxu0 0.0
        %1599 = vmatpush1.msra.mxu0 0.0
        %1600 = vmatprep.subr.mxu0 0.0
        %1601 = vmatpush1.msra.mxu0 0.0
        %1602 = vmatprep.subr.mxu0 0.0
        %1603 = vmatpush1.msra.mxu0 0.0
        %1604 = vmatprep.subr.mxu0 0.0
        %1605 = vmatpush1.msra.mxu0 0.0
        %1606 = vmatprep.subr.mxu0 0.0
        %1607 = vmatpush1.msra.mxu0 0.0
        %1608 = vmatprep.subr.mxu0 0.0
        %1609 = vmatpush1.msra.mxu0 0.0
        %1610 = vmatprep.subr.mxu0 0.0
        %1611 = vmatpush1.msra.mxu0 0.0
        %1612 = vmatprep.mubr.f32.mxu0 0.0
        %1613 = vmatmul.mubr.f32.gmra.mrb[0].mxu0 %v1523
        %v1614 = vpop.f32.mrb[0].mxu0
        %v1615 = vadd.f32 0.0, %v1614
        %v1616 = vpop.f32.mrb[0].mxu0
        %1617 = vmatprep.mubr.f32.mxu0 0.0
        %1618 = vmatmul.mubr.f32.gmra.mrb[0].mxu0 %v1524
        %v1619 = vpop.f32.mrb[0].mxu0
        %v1620 = vadd.f32 0.0, %v1619
        %v1621 = vpop.f32.mrb[0].mxu0
        %1622 = vmatprep.mubr.f32.mxu0 0.0
        %1623 = vmatmul.mubr.f32.gmra.mrb[0].mxu0 %v1525
        %v1624 = vpop.f32.mrb[0].mxu0
        %v1625 = vadd.f32 0.0, %v1624
        %v1626 = vpop.f32.mrb[0].mxu0
        %1627 = vmatprep.mubr.f32.mxu0 0.0
        %1628 = vmatmul.mubr.f32.gmra.mrb[0].mxu0 %v1526
        %v1629 = vpop.f32.mrb[0].mxu0
        %v1630 = vadd.f32 0.0, %v1629
        %v1631 = vpop.f32.mrb[0].mxu0
        %1632 = vmatprep.mubr.f32.mxu0 0.0
        %1633 = vmatmul.mubr.f32.gmra.mrb[0].mxu0 %v1527
        %v1634 = vpop.f32.mrb[0].mxu0
        %v1635 = vadd.f32 0.0, %v1634
        %v1636 = vpop.f32.mrb[0].mxu0
        %1637 = vmatprep.mubr.f32.mxu0 0.0
        %1638 = vmatmul.mubr.f32.gmra.mrb[0].mxu0 %v1528
        %v1639 = vpop.f32.mrb[0].mxu0
        %v1640 = vadd.f32 0.0, %v1639
        %v1641 = vpop.f32.mrb[0].mxu0
        %1642 = vmatprep.mubr.f32.mxu0 0.0
        %1643 = vmatmul.mubr.f32.gmra.mrb[0].mxu0 %v1529
        %v1644 = vpop.f32.mrb[0].mxu0
        %v1645 = vadd.f32 0.0, %v1644
        %v1646 = vpop.f32.mrb[0].mxu0
        %1647 = vmatprep.mubr.f32.mxu0 0.0
        %1648 = vmatmul.mubr.f32.gmra.mrb[0].mxu0 %v1530
        %v1649 = vpop.f32.mrb[0].mxu0
        %v1650 = vadd.f32 0.0, %v1649
        %v1651 = vpop.f32.mrb[0].mxu0
        %1652 = vdwg.mxu0
        %v1653 = vadd.f32 %v1515, %v1615
        %v1654 = vadd.f32 %v1516, %v1620
        %v1655 = vadd.f32 %v1517, %v1625
        %v1656 = vadd.f32 %v1518, %v1630
        %v1657 = vadd.f32 %v1519, %v1635
        %v1658 = vadd.f32 %v1520, %v1640
        %v1659 = vadd.f32 %v1521, %v1645
        %v1660 = vadd.f32 %v1522, %v1650
        %v1661 = vld [vmem:[%s979 + $0x2] sm:$0xff]
        %v1662 = vld [vmem:[%s979 + $0x12] sm:$0xff]
        %v1663 = vld [vmem:[%s979 + $0x22] sm:$0xff]
        %v1664 = vld [vmem:[%s979 + $0x32] sm:$0xff]
        %v1665 = vld [vmem:[%s979 + $0x42] sm:$0xff]
        %v1666 = vld [vmem:[%s979 + $0x52] sm:$0xff]
        %v1667 = vld [vmem:[%s979 + $0x62] sm:$0xff]
        %v1668 = vld [vmem:[%s979 + $0x72] sm:$0xff]
        %s1669 = scalar_lea.vmem [#allocation4], 640
        %v1670 = vld [vmem:[%s1669] sm:$0xff]
        %v1671 = vld [vmem:[%s1669 + $0x8] sm:$0xff]
        %v1672 = vld [vmem:[%s1669 + $0x10] sm:$0xff]
        %v1673 = vld [vmem:[%s1669 + $0x18] sm:$0xff]
        %v1674 = vld [vmem:[%s1669 + $0x20] sm:$0xff]
        %v1675 = vld [vmem:[%s1669 + $0x28] sm:$0xff]
        %v1676 = vld [vmem:[%s1669 + $0x30] sm:$0xff]
        %v1677 = vld [vmem:[%s1669 + $0x38] sm:$0xff]
        %v1678 = vld [vmem:[%s1669 + $0x40] sm:$0xff]
        %v1679 = vld [vmem:[%s1669 + $0x48] sm:$0xff]
        %v1680 = vld [vmem:[%s1669 + $0x50] sm:$0xff]
        %v1681 = vld [vmem:[%s1669 + $0x58] sm:$0xff]
        %v1682 = vld [vmem:[%s1669 + $0x60] sm:$0xff]
        %v1683 = vld [vmem:[%s1669 + $0x68] sm:$0xff]
        %v1684 = vld [vmem:[%s1669 + $0x70] sm:$0xff]
        %v1685 = vld [vmem:[%s1669 + $0x78] sm:$0xff]
        %1686 = vmatprep.subr.mxu0 0.0
        %1687 = vmatpush1.msra.mxu0 %v1670
        %1688 = vmatprep.subr.mxu0 0.0
        %1689 = vmatpush1.msra.mxu0 %v1671
        %1690 = vmatprep.subr.mxu0 0.0
        %1691 = vmatpush1.msra.mxu0 %v1672
        %1692 = vmatprep.subr.mxu0 0.0
        %1693 = vmatpush1.msra.mxu0 %v1673
        %1694 = vmatprep.subr.mxu0 0.0
        %1695 = vmatpush1.msra.mxu0 %v1674
        %1696 = vmatprep.subr.mxu0 0.0
        %1697 = vmatpush1.msra.mxu0 %v1675
        %1698 = vmatprep.subr.mxu0 0.0
        %1699 = vmatpush1.msra.mxu0 %v1676
        %1700 = vmatprep.subr.mxu0 0.0
        %1701 = vmatpush1.msra.mxu0 %v1677
        %1702 = vmatprep.subr.mxu0 0.0
        %1703 = vmatpush1.msra.mxu0 %v1678
        %1704 = vmatprep.subr.mxu0 0.0
        %1705 = vmatpush1.msra.mxu0 %v1679
        %1706 = vmatprep.subr.mxu0 0.0
        %1707 = vmatpush1.msra.mxu0 %v1680
        %1708 = vmatprep.subr.mxu0 0.0
        %1709 = vmatpush1.msra.mxu0 %v1681
        %1710 = vmatprep.subr.mxu0 0.0
        %1711 = vmatpush1.msra.mxu0 %v1682
        %1712 = vmatprep.subr.mxu0 0.0
        %1713 = vmatpush1.msra.mxu0 %v1683
        %1714 = vmatprep.subr.mxu0 0.0
        %1715 = vmatpush1.msra.mxu0 %v1684
        %1716 = vmatprep.subr.mxu0 0.0
        %1717 = vmatpush1.msra.mxu0 %v1685
        %1718 = vmatprep.subr.mxu0 0.0
        %1719 = vmatpush1.msra.mxu0 0.0
        %1720 = vmatprep.subr.mxu0 0.0
        %1721 = vmatpush1.msra.mxu0 0.0
        %1722 = vmatprep.subr.mxu0 0.0
        %1723 = vmatpush1.msra.mxu0 0.0
        %1724 = vmatprep.subr.mxu0 0.0
        %1725 = vmatpush1.msra.mxu0 0.0
        %1726 = vmatprep.subr.mxu0 0.0
        %1727 = vmatpush1.msra.mxu0 0.0
        %1728 = vmatprep.subr.mxu0 0.0
        %1729 = vmatpush1.msra.mxu0 0.0
        %1730 = vmatprep.subr.mxu0 0.0
        %1731 = vmatpush1.msra.mxu0 0.0
        %1732 = vmatprep.subr.mxu0 0.0
        %1733 = vmatpush1.msra.mxu0 0.0
        %1734 = vmatprep.subr.mxu0 0.0
        %1735 = vmatpush1.msra.mxu0 0.0
        %1736 = vmatprep.subr.mxu0 0.0
        %1737 = vmatpush1.msra.mxu0 0.0
        %1738 = vmatprep.subr.mxu0 0.0
        %1739 = vmatpush1.msra.mxu0 0.0
        %1740 = vmatprep.subr.mxu0 0.0
        %1741 = vmatpush1.msra.mxu0 0.0
        %1742 = vmatprep.subr.mxu0 0.0
        %1743 = vmatpush1.msra.mxu0 0.0
        %1744 = vmatprep.subr.mxu0 0.0
        %1745 = vmatpush1.msra.mxu0 0.0
        %1746 = vmatprep.subr.mxu0 0.0
        %1747 = vmatpush1.msra.mxu0 0.0
        %1748 = vmatprep.subr.mxu0 0.0
        %1749 = vmatpush1.msra.mxu0 0.0
        %1750 = vmatprep.mubr.f32.mxu0 0.0
        %1751 = vmatmul.mubr.f32.gmra.mrb[0].mxu0 %v1661
        %v1752 = vpop.f32.mrb[0].mxu0
        %v1753 = vadd.f32 0.0, %v1752
        %v1754 = vpop.f32.mrb[0].mxu0
        %1755 = vmatprep.mubr.f32.mxu0 0.0
        %1756 = vmatmul.mubr.f32.gmra.mrb[0].mxu0 %v1662
        %v1757 = vpop.f32.mrb[0].mxu0
        %v1758 = vadd.f32 0.0, %v1757
        %v1759 = vpop.f32.mrb[0].mxu0
        %1760 = vmatprep.mubr.f32.mxu0 0.0
        %1761 = vmatmul.mubr.f32.gmra.mrb[0].mxu0 %v1663
        %v1762 = vpop.f32.mrb[0].mxu0
        %v1763 = vadd.f32 0.0, %v1762
        %v1764 = vpop.f32.mrb[0].mxu0
        %1765 = vmatprep.mubr.f32.mxu0 0.0
        %1766 = vmatmul.mubr.f32.gmra.mrb[0].mxu0 %v1664
        %v1767 = vpop.f32.mrb[0].mxu0
        %v1768 = vadd.f32 0.0, %v1767
        %v1769 = vpop.f32.mrb[0].mxu0
        %1770 = vmatprep.mubr.f32.mxu0 0.0
        %1771 = vmatmul.mubr.f32.gmra.mrb[0].mxu0 %v1665
        %v1772 = vpop.f32.mrb[0].mxu0
        %v1773 = vadd.f32 0.0, %v1772
        %v1774 = vpop.f32.mrb[0].mxu0
        %1775 = vmatprep.mubr.f32.mxu0 0.0
        %1776 = vmatmul.mubr.f32.gmra.mrb[0].mxu0 %v1666
        %v1777 = vpop.f32.mrb[0].mxu0
        %v1778 = vadd.f32 0.0, %v1777
        %v1779 = vpop.f32.mrb[0].mxu0
        %1780 = vmatprep.mubr.f32.mxu0 0.0
        %1781 = vmatmul.mubr.f32.gmra.mrb[0].mxu0 %v1667
        %v1782 = vpop.f32.mrb[0].mxu0
        %v1783 = vadd.f32 0.0, %v1782
        %v1784 = vpop.f32.mrb[0].mxu0
        %1785 = vmatprep.mubr.f32.mxu0 0.0
        %1786 = vmatmul.mubr.f32.gmra.mrb[0].mxu0 %v1668
        %v1787 = vpop.f32.mrb[0].mxu0
        %v1788 = vadd.f32 0.0, %v1787
        %v1789 = vpop.f32.mrb[0].mxu0
        %1790 = vdwg.mxu0
        %v1791 = vadd.f32 %v1653, %v1753
        %v1792 = vadd.f32 %v1654, %v1758
        %v1793 = vadd.f32 %v1655, %v1763
        %v1794 = vadd.f32 %v1656, %v1768
        %v1795 = vadd.f32 %v1657, %v1773
        %v1796 = vadd.f32 %v1658, %v1778
        %v1797 = vadd.f32 %v1659, %v1783
        %v1798 = vadd.f32 %v1660, %v1788
        %s1799 = scalar_lea.vmem [#allocation3], 32
        %v1800 = vld [vmem:[%s1799] sm:$0xff]
        %v1801 = vld [vmem:[%s1799 + $0x10] sm:$0xff]
        %v1802 = vld [vmem:[%s1799 + $0x20] sm:$0xff]
        %v1803 = vld [vmem:[%s1799 + $0x30] sm:$0xff]
        %v1804 = vld [vmem:[%s1799 + $0x40] sm:$0xff]
        %v1805 = vld [vmem:[%s1799 + $0x50] sm:$0xff]
        %v1806 = vld [vmem:[%s1799 + $0x60] sm:$0xff]
        %v1807 = vld [vmem:[%s1799 + $0x70] sm:$0xff]
        %s1808 = scalar_lea.vmem [#allocation4], 768
        %v1809 = vld [vmem:[%s1808] sm:$0xff]
        %v1810 = vld [vmem:[%s1808 + $0x8] sm:$0xff]
        %v1811 = vld [vmem:[%s1808 + $0x10] sm:$0xff]
        %v1812 = vld [vmem:[%s1808 + $0x18] sm:$0xff]
        %v1813 = vld [vmem:[%s1808 + $0x20] sm:$0xff]
        %v1814 = vld [vmem:[%s1808 + $0x28] sm:$0xff]
        %v1815 = vld [vmem:[%s1808 + $0x30] sm:$0xff]
        %v1816 = vld [vmem:[%s1808 + $0x38] sm:$0xff]
        %v1817 = vld [vmem:[%s1808 + $0x40] sm:$0xff]
        %v1818 = vld [vmem:[%s1808 + $0x48] sm:$0xff]
        %v1819 = vld [vmem:[%s1808 + $0x50] sm:$0xff]
        %v1820 = vld [vmem:[%s1808 + $0x58] sm:$0xff]
        %v1821 = vld [vmem:[%s1808 + $0x60] sm:$0xff]
        %v1822 = vld [vmem:[%s1808 + $0x68] sm:$0xff]
        %v1823 = vld [vmem:[%s1808 + $0x70] sm:$0xff]
        %v1824 = vld [vmem:[%s1808 + $0x78] sm:$0xff]
        %1825 = vmatprep.subr.mxu0 0.0
        %1826 = vmatpush1.msra.mxu0 %v1809
        %1827 = vmatprep.subr.mxu0 0.0
        %1828 = vmatpush1.msra.mxu0 %v1810
        %1829 = vmatprep.subr.mxu0 0.0
        %1830 = vmatpush1.msra.mxu0 %v1811
        %1831 = vmatprep.subr.mxu0 0.0
        %1832 = vmatpush1.msra.mxu0 %v1812
        %1833 = vmatprep.subr.mxu0 0.0
        %1834 = vmatpush1.msra.mxu0 %v1813
        %1835 = vmatprep.subr.mxu0 0.0
        %1836 = vmatpush1.msra.mxu0 %v1814
        %1837 = vmatprep.subr.mxu0 0.0
        %1838 = vmatpush1.msra.mxu0 %v1815
        %1839 = vmatprep.subr.mxu0 0.0
        %1840 = vmatpush1.msra.mxu0 %v1816
        %1841 = vmatprep.subr.mxu0 0.0
        %1842 = vmatpush1.msra.mxu0 %v1817
        %1843 = vmatprep.subr.mxu0 0.0
        %1844 = vmatpush1.msra.mxu0 %v1818
        %1845 = vmatprep.subr.mxu0 0.0
        %1846 = vmatpush1.msra.mxu0 %v1819
        %1847 = vmatprep.subr.mxu0 0.0
        %1848 = vmatpush1.msra.mxu0 %v1820
        %1849 = vmatprep.subr.mxu0 0.0
        %1850 = vmatpush1.msra.mxu0 %v1821
        %1851 = vmatprep.subr.mxu0 0.0
        %1852 = vmatpush1.msra.mxu0 %v1822
        %1853 = vmatprep.subr.mxu0 0.0
        %1854 = vmatpush1.msra.mxu0 %v1823
        %1855 = vmatprep.subr.mxu0 0.0
        %1856 = vmatpush1.msra.mxu0 %v1824
        %1857 = vmatprep.subr.mxu0 0.0
        %1858 = vmatpush1.msra.mxu0 0.0
        %1859 = vmatprep.subr.mxu0 0.0
        %1860 = vmatpush1.msra.mxu0 0.0
        %1861 = vmatprep.subr.mxu0 0.0
        %1862 = vmatpush1.msra.mxu0 0.0
        %1863 = vmatprep.subr.mxu0 0.0
        %1864 = vmatpush1.msra.mxu0 0.0
        %1865 = vmatprep.subr.mxu0 0.0
        %1866 = vmatpush1.msra.mxu0 0.0
        %1867 = vmatprep.subr.mxu0 0.0
        %1868 = vmatpush1.msra.mxu0 0.0
        %1869 = vmatprep.subr.mxu0 0.0
        %1870 = vmatpush1.msra.mxu0 0.0
        %1871 = vmatprep.subr.mxu0 0.0
        %1872 = vmatpush1.msra.mxu0 0.0
        %1873 = vmatprep.subr.mxu0 0.0
        %1874 = vmatpush1.msra.mxu0 0.0
        %1875 = vmatprep.subr.mxu0 0.0
        %1876 = vmatpush1.msra.mxu0 0.0
        %1877 = vmatprep.subr.mxu0 0.0
        %1878 = vmatpush1.msra.mxu0 0.0
        %1879 = vmatprep.subr.mxu0 0.0
        %1880 = vmatpush1.msra.mxu0 0.0
        %1881 = vmatprep.subr.mxu0 0.0
        %1882 = vmatpush1.msra.mxu0 0.0
        %1883 = vmatprep.subr.mxu0 0.0
        %1884 = vmatpush1.msra.mxu0 0.0
        %1885 = vmatprep.subr.mxu0 0.0
        %1886 = vmatpush1.msra.mxu0 0.0
        %1887 = vmatprep.subr.mxu0 0.0
        %1888 = vmatpush1.msra.mxu0 0.0
        %1889 = vmatprep.mubr.f32.mxu0 0.0
        %1890 = vmatmul.mubr.f32.gmra.mrb[0].mxu0 %v1800
        %v1891 = vpop.f32.mrb[0].mxu0
        %v1892 = vadd.f32 0.0, %v1891
        %v1893 = vpop.f32.mrb[0].mxu0
        %1894 = vmatprep.mubr.f32.mxu0 0.0
        %1895 = vmatmul.mubr.f32.gmra.mrb[0].mxu0 %v1801
        %v1896 = vpop.f32.mrb[0].mxu0
        %v1897 = vadd.f32 0.0, %v1896
        %v1898 = vpop.f32.mrb[0].mxu0
        %1899 = vmatprep.mubr.f32.mxu0 0.0
        %1900 = vmatmul.mubr.f32.gmra.mrb[0].mxu0 %v1802
        %v1901 = vpop.f32.mrb[0].mxu0
        %v1902 = vadd.f32 0.0, %v1901
        %v1903 = vpop.f32.mrb[0].mxu0
        %1904 = vmatprep.mubr.f32.mxu0 0.0
        %1905 = vmatmul.mubr.f32.gmra.mrb[0].mxu0 %v1803
        %v1906 = vpop.f32.mrb[0].mxu0
        %v1907 = vadd.f32 0.0, %v1906
        %v1908 = vpop.f32.mrb[0].mxu0
        %1909 = vmatprep.mubr.f32.mxu0 0.0
        %1910 = vmatmul.mubr.f32.gmra.mrb[0].mxu0 %v1804
        %v1911 = vpop.f32.mrb[0].mxu0
        %v1912 = vadd.f32 0.0, %v1911
        %v1913 = vpop.f32.mrb[0].mxu0
        %1914 = vmatprep.mubr.f32.mxu0 0.0
        %1915 = vmatmul.mubr.f32.gmra.mrb[0].mxu0 %v1805
        %v1916 = vpop.f32.mrb[0].mxu0
        %v1917 = vadd.f32 0.0, %v1916
        %v1918 = vpop.f32.mrb[0].mxu0
        %1919 = vmatprep.mubr.f32.mxu0 0.0
        %1920 = vmatmul.mubr.f32.gmra.mrb[0].mxu0 %v1806
        %v1921 = vpop.f32.mrb[0].mxu0
        %v1922 = vadd.f32 0.0, %v1921
        %v1923 = vpop.f32.mrb[0].mxu0
        %1924 = vmatprep.mubr.f32.mxu0 0.0
        %1925 = vmatmul.mubr.f32.gmra.mrb[0].mxu0 %v1807
        %v1926 = vpop.f32.mrb[0].mxu0
        %v1927 = vadd.f32 0.0, %v1926
        %v1928 = vpop.f32.mrb[0].mxu0
        %1929 = vdwg.mxu0
        %v1930 = vadd.f32 %v1791, %v1892
        %v1931 = vadd.f32 %v1792, %v1897
        %v1932 = vadd.f32 %v1793, %v1902
        %v1933 = vadd.f32 %v1794, %v1907
        %v1934 = vadd.f32 %v1795, %v1912
        %v1935 = vadd.f32 %v1796, %v1917
        %v1936 = vadd.f32 %v1797, %v1922
        %v1937 = vadd.f32 %v1798, %v1927
        %v1938 = vld [vmem:[%s1799 + $0x1] sm:$0xff]
        %v1939 = vld [vmem:[%s1799 + $0x11] sm:$0xff]
        %v1940 = vld [vmem:[%s1799 + $0x21] sm:$0xff]
        %v1941 = vld [vmem:[%s1799 + $0x31] sm:$0xff]
        %v1942 = vld [vmem:[%s1799 + $0x41] sm:$0xff]
        %v1943 = vld [vmem:[%s1799 + $0x51] sm:$0xff]
        %v1944 = vld [vmem:[%s1799 + $0x61] sm:$0xff]
        %v1945 = vld [vmem:[%s1799 + $0x71] sm:$0xff]
        %s1946 = scalar_lea.vmem [#allocation4], 896
        %v1947 = vld [vmem:[%s1946] sm:$0xff]
        %v1948 = vld [vmem:[%s1946 + $0x8] sm:$0xff]
        %v1949 = vld [vmem:[%s1946 + $0x10] sm:$0xff]
        %v1950 = vld [vmem:[%s1946 + $0x18] sm:$0xff]
        %v1951 = vld [vmem:[%s1946 + $0x20] sm:$0xff]
        %v1952 = vld [vmem:[%s1946 + $0x28] sm:$0xff]
        %v1953 = vld [vmem:[%s1946 + $0x30] sm:$0xff]
        %v1954 = vld [vmem:[%s1946 + $0x38] sm:$0xff]
        %v1955 = vld [vmem:[%s1946 + $0x40] sm:$0xff]
        %v1956 = vld [vmem:[%s1946 + $0x48] sm:$0xff]
        %v1957 = vld [vmem:[%s1946 + $0x50] sm:$0xff]
        %v1958 = vld [vmem:[%s1946 + $0x58] sm:$0xff]
        %v1959 = vld [vmem:[%s1946 + $0x60] sm:$0xff]
        %v1960 = vld [vmem:[%s1946 + $0x68] sm:$0xff]
        %v1961 = vld [vmem:[%s1946 + $0x70] sm:$0xff]
        %v1962 = vld [vmem:[%s1946 + $0x78] sm:$0xff]
        %1963 = vmatprep.subr.mxu0 0.0
        %1964 = vmatpush1.msra.mxu0 %v1947
        %1965 = vmatprep.subr.mxu0 0.0
        %1966 = vmatpush1.msra.mxu0 %v1948
        %1967 = vmatprep.subr.mxu0 0.0
        %1968 = vmatpush1.msra.mxu0 %v1949
        %1969 = vmatprep.subr.mxu0 0.0
        %1970 = vmatpush1.msra.mxu0 %v1950
        %1971 = vmatprep.subr.mxu0 0.0
        %1972 = vmatpush1.msra.mxu0 %v1951
        %1973 = vmatprep.subr.mxu0 0.0
        %1974 = vmatpush1.msra.mxu0 %v1952
        %1975 = vmatprep.subr.mxu0 0.0
        %1976 = vmatpush1.msra.mxu0 %v1953
        %1977 = vmatprep.subr.mxu0 0.0
        %1978 = vmatpush1.msra.mxu0 %v1954
        %1979 = vmatprep.subr.mxu0 0.0
        %1980 = vmatpush1.msra.mxu0 %v1955
        %1981 = vmatprep.subr.mxu0 0.0
        %1982 = vmatpush1.msra.mxu0 %v1956
        %1983 = vmatprep.subr.mxu0 0.0
        %1984 = vmatpush1.msra.mxu0 %v1957
        %1985 = vmatprep.subr.mxu0 0.0
        %1986 = vmatpush1.msra.mxu0 %v1958
        %1987 = vmatprep.subr.mxu0 0.0
        %1988 = vmatpush1.msra.mxu0 %v1959
        %1989 = vmatprep.subr.mxu0 0.0
        %1990 = vmatpush1.msra.mxu0 %v1960
        %1991 = vmatprep.subr.mxu0 0.0
        %1992 = vmatpush1.msra.mxu0 %v1961
        %1993 = vmatprep.subr.mxu0 0.0
        %1994 = vmatpush1.msra.mxu0 %v1962
        %1995 = vmatprep.subr.mxu0 0.0
        %1996 = vmatpush1.msra.mxu0 0.0
        %1997 = vmatprep.subr.mxu0 0.0
        %1998 = vmatpush1.msra.mxu0 0.0
        %1999 = vmatprep.subr.mxu0 0.0
        %2000 = vmatpush1.msra.mxu0 0.0
        %2001 = vmatprep.subr.mxu0 0.0
        %2002 = vmatpush1.msra.mxu0 0.0
        %2003 = vmatprep.subr.mxu0 0.0
        %2004 = vmatpush1.msra.mxu0 0.0
        %2005 = vmatprep.subr.mxu0 0.0
        %2006 = vmatpush1.msra.mxu0 0.0
        %2007 = vmatprep.subr.mxu0 0.0
        %2008 = vmatpush1.msra.mxu0 0.0
        %2009 = vmatprep.subr.mxu0 0.0
        %2010 = vmatpush1.msra.mxu0 0.0
        %2011 = vmatprep.subr.mxu0 0.0
        %2012 = vmatpush1.msra.mxu0 0.0
        %2013 = vmatprep.subr.mxu0 0.0
        %2014 = vmatpush1.msra.mxu0 0.0
        %2015 = vmatprep.subr.mxu0 0.0
        %2016 = vmatpush1.msra.mxu0 0.0
        %2017 = vmatprep.subr.mxu0 0.0
        %2018 = vmatpush1.msra.mxu0 0.0
        %2019 = vmatprep.subr.mxu0 0.0
        %2020 = vmatpush1.msra.mxu0 0.0
        %2021 = vmatprep.subr.mxu0 0.0
        %2022 = vmatpush1.msra.mxu0 0.0
        %2023 = vmatprep.subr.mxu0 0.0
        %2024 = vmatpush1.msra.mxu0 0.0
        %2025 = vmatprep.subr.mxu0 0.0
        %2026 = vmatpush1.msra.mxu0 0.0
        %2027 = vmatprep.mubr.f32.mxu0 0.0
        %2028 = vmatmul.mubr.f32.gmra.mrb[0].mxu0 %v1938
        %v2029 = vpop.f32.mrb[0].mxu0
        %v2030 = vadd.f32 0.0, %v2029
        %v2031 = vpop.f32.mrb[0].mxu0
        %2032 = vmatprep.mubr.f32.mxu0 0.0
        %2033 = vmatmul.mubr.f32.gmra.mrb[0].mxu0 %v1939
        %v2034 = vpop.f32.mrb[0].mxu0
        %v2035 = vadd.f32 0.0, %v2034
        %v2036 = vpop.f32.mrb[0].mxu0
        %2037 = vmatprep.mubr.f32.mxu0 0.0
        %2038 = vmatmul.mubr.f32.gmra.mrb[0].mxu0 %v1940
        %v2039 = vpop.f32.mrb[0].mxu0
        %v2040 = vadd.f32 0.0, %v2039
        %v2041 = vpop.f32.mrb[0].mxu0
        %2042 = vmatprep.mubr.f32.mxu0 0.0
        %2043 = vmatmul.mubr.f32.gmra.mrb[0].mxu0 %v1941
        %v2044 = vpop.f32.mrb[0].mxu0
        %v2045 = vadd.f32 0.0, %v2044
        %v2046 = vpop.f32.mrb[0].mxu0
        %2047 = vmatprep.mubr.f32.mxu0 0.0
        %2048 = vmatmul.mubr.f32.gmra.mrb[0].mxu0 %v1942
        %v2049 = vpop.f32.mrb[0].mxu0
        %v2050 = vadd.f32 0.0, %v2049
        %v2051 = vpop.f32.mrb[0].mxu0
        %2052 = vmatprep.mubr.f32.mxu0 0.0
        %2053 = vmatmul.mubr.f32.gmra.mrb[0].mxu0 %v1943
        %v2054 = vpop.f32.mrb[0].mxu0
        %v2055 = vadd.f32 0.0, %v2054
        %v2056 = vpop.f32.mrb[0].mxu0
        %2057 = vmatprep.mubr.f32.mxu0 0.0
        %2058 = vmatmul.mubr.f32.gmra.mrb[0].mxu0 %v1944
        %v2059 = vpop.f32.mrb[0].mxu0
        %v2060 = vadd.f32 0.0, %v2059
        %v2061 = vpop.f32.mrb[0].mxu0
        %2062 = vmatprep.mubr.f32.mxu0 0.0
        %2063 = vmatmul.mubr.f32.gmra.mrb[0].mxu0 %v1945
        %v2064 = vpop.f32.mrb[0].mxu0
        %v2065 = vadd.f32 0.0, %v2064
        %v2066 = vpop.f32.mrb[0].mxu0
        %2067 = vdwg.mxu0
        %v2068 = vadd.f32 %v1930, %v2030
        %v2069 = vadd.f32 %v1931, %v2035
        %v2070 = vadd.f32 %v1932, %v2040
        %v2071 = vadd.f32 %v1933, %v2045
        %v2072 = vadd.f32 %v1934, %v2050
        %v2073 = vadd.f32 %v1935, %v2055
        %v2074 = vadd.f32 %v1936, %v2060
        %v2075 = vadd.f32 %v1937, %v2065
        %v2076 = vld [vmem:[%s1799 + $0x2] sm:$0xff]
        %v2077 = vld [vmem:[%s1799 + $0x12] sm:$0xff]
        %v2078 = vld [vmem:[%s1799 + $0x22] sm:$0xff]
        %v2079 = vld [vmem:[%s1799 + $0x32] sm:$0xff]
        %v2080 = vld [vmem:[%s1799 + $0x42] sm:$0xff]
        %v2081 = vld [vmem:[%s1799 + $0x52] sm:$0xff]
        %v2082 = vld [vmem:[%s1799 + $0x62] sm:$0xff]
        %v2083 = vld [vmem:[%s1799 + $0x72] sm:$0xff]
        %s2084 = scalar_lea.vmem [#allocation4], 1024
        %v2085 = vld [vmem:[%s2084] sm:$0xff]
        %v2086 = vld [vmem:[%s2084 + $0x8] sm:$0xff]
        %v2087 = vld [vmem:[%s2084 + $0x10] sm:$0xff]
        %v2088 = vld [vmem:[%s2084 + $0x18] sm:$0xff]
        %v2089 = vld [vmem:[%s2084 + $0x20] sm:$0xff]
        %v2090 = vld [vmem:[%s2084 + $0x28] sm:$0xff]
        %v2091 = vld [vmem:[%s2084 + $0x30] sm:$0xff]
        %v2092 = vld [vmem:[%s2084 + $0x38] sm:$0xff]
        %v2093 = vld [vmem:[%s2084 + $0x40] sm:$0xff]
        %v2094 = vld [vmem:[%s2084 + $0x48] sm:$0xff]
        %v2095 = vld [vmem:[%s2084 + $0x50] sm:$0xff]
        %v2096 = vld [vmem:[%s2084 + $0x58] sm:$0xff]
        %v2097 = vld [vmem:[%s2084 + $0x60] sm:$0xff]
        %v2098 = vld [vmem:[%s2084 + $0x68] sm:$0xff]
        %v2099 = vld [vmem:[%s2084 + $0x70] sm:$0xff]
        %v2100 = vld [vmem:[%s2084 + $0x78] sm:$0xff]
        %2101 = vmatprep.subr.mxu0 0.0
        %2102 = vmatpush1.msra.mxu0 %v2085
        %2103 = vmatprep.subr.mxu0 0.0
        %2104 = vmatpush1.msra.mxu0 %v2086
        %2105 = vmatprep.subr.mxu0 0.0
        %2106 = vmatpush1.msra.mxu0 %v2087
        %2107 = vmatprep.subr.mxu0 0.0
        %2108 = vmatpush1.msra.mxu0 %v2088
        %2109 = vmatprep.subr.mxu0 0.0
        %2110 = vmatpush1.msra.mxu0 %v2089
        %2111 = vmatprep.subr.mxu0 0.0
        %2112 = vmatpush1.msra.mxu0 %v2090
        %2113 = vmatprep.subr.mxu0 0.0
        %2114 = vmatpush1.msra.mxu0 %v2091
        %2115 = vmatprep.subr.mxu0 0.0
        %2116 = vmatpush1.msra.mxu0 %v2092
        %2117 = vmatprep.subr.mxu0 0.0
        %2118 = vmatpush1.msra.mxu0 %v2093
        %2119 = vmatprep.subr.mxu0 0.0
        %2120 = vmatpush1.msra.mxu0 %v2094
        %2121 = vmatprep.subr.mxu0 0.0
        %2122 = vmatpush1.msra.mxu0 %v2095
        %2123 = vmatprep.subr.mxu0 0.0
        %2124 = vmatpush1.msra.mxu0 %v2096
        %2125 = vmatprep.subr.mxu0 0.0
        %2126 = vmatpush1.msra.mxu0 %v2097
        %2127 = vmatprep.subr.mxu0 0.0
        %2128 = vmatpush1.msra.mxu0 %v2098
        %2129 = vmatprep.subr.mxu0 0.0
        %2130 = vmatpush1.msra.mxu0 %v2099
        %2131 = vmatprep.subr.mxu0 0.0
        %2132 = vmatpush1.msra.mxu0 %v2100
        %2133 = vmatprep.subr.mxu0 0.0
        %2134 = vmatpush1.msra.mxu0 0.0
        %2135 = vmatprep.subr.mxu0 0.0
        %2136 = vmatpush1.msra.mxu0 0.0
        %2137 = vmatprep.subr.mxu0 0.0
        %2138 = vmatpush1.msra.mxu0 0.0
        %2139 = vmatprep.subr.mxu0 0.0
        %2140 = vmatpush1.msra.mxu0 0.0
        %2141 = vmatprep.subr.mxu0 0.0
        %2142 = vmatpush1.msra.mxu0 0.0
        %2143 = vmatprep.subr.mxu0 0.0
        %2144 = vmatpush1.msra.mxu0 0.0
        %2145 = vmatprep.subr.mxu0 0.0
        %2146 = vmatpush1.msra.mxu0 0.0
        %2147 = vmatprep.subr.mxu0 0.0
        %2148 = vmatpush1.msra.mxu0 0.0
        %2149 = vmatprep.subr.mxu0 0.0
        %2150 = vmatpush1.msra.mxu0 0.0
        %2151 = vmatprep.subr.mxu0 0.0
        %2152 = vmatpush1.msra.mxu0 0.0
        %2153 = vmatprep.subr.mxu0 0.0
        %2154 = vmatpush1.msra.mxu0 0.0
        %2155 = vmatprep.subr.mxu0 0.0
        %2156 = vmatpush1.msra.mxu0 0.0
        %2157 = vmatprep.subr.mxu0 0.0
        %2158 = vmatpush1.msra.mxu0 0.0
        %2159 = vmatprep.subr.mxu0 0.0
        %2160 = vmatpush1.msra.mxu0 0.0
        %2161 = vmatprep.subr.mxu0 0.0
        %2162 = vmatpush1.msra.mxu0 0.0
        %2163 = vmatprep.subr.mxu0 0.0
        %2164 = vmatpush1.msra.mxu0 0.0
        %2165 = vmatprep.mubr.f32.mxu0 0.0
        %2166 = vmatmul.mubr.f32.gmra.mrb[0].mxu0 %v2076
        %v2167 = vpop.f32.mrb[0].mxu0
        %v2168 = vadd.f32 0.0, %v2167
        %v2169 = vpop.f32.mrb[0].mxu0
        %2170 = vmatprep.mubr.f32.mxu0 0.0
        %2171 = vmatmul.mubr.f32.gmra.mrb[0].mxu0 %v2077
        %v2172 = vpop.f32.mrb[0].mxu0
        %v2173 = vadd.f32 0.0, %v2172
        %v2174 = vpop.f32.mrb[0].mxu0
        %2175 = vmatprep.mubr.f32.mxu0 0.0
        %2176 = vmatmul.mubr.f32.gmra.mrb[0].mxu0 %v2078
        %v2177 = vpop.f32.mrb[0].mxu0
        %v2178 = vadd.f32 0.0, %v2177
        %v2179 = vpop.f32.mrb[0].mxu0
        %2180 = vmatprep.mubr.f32.mxu0 0.0
        %2181 = vmatmul.mubr.f32.gmra.mrb[0].mxu0 %v2079
        %v2182 = vpop.f32.mrb[0].mxu0
        %v2183 = vadd.f32 0.0, %v2182
        %v2184 = vpop.f32.mrb[0].mxu0
        %2185 = vmatprep.mubr.f32.mxu0 0.0
        %2186 = vmatmul.mubr.f32.gmra.mrb[0].mxu0 %v2080
        %v2187 = vpop.f32.mrb[0].mxu0
        %v2188 = vadd.f32 0.0, %v2187
        %v2189 = vpop.f32.mrb[0].mxu0
        %2190 = vmatprep.mubr.f32.mxu0 0.0
        %2191 = vmatmul.mubr.f32.gmra.mrb[0].mxu0 %v2081
        %v2192 = vpop.f32.mrb[0].mxu0
        %v2193 = vadd.f32 0.0, %v2192
        %v2194 = vpop.f32.mrb[0].mxu0
        %2195 = vmatprep.mubr.f32.mxu0 0.0
        %2196 = vmatmul.mubr.f32.gmra.mrb[0].mxu0 %v2082
        %v2197 = vpop.f32.mrb[0].mxu0
        %v2198 = vadd.f32 0.0, %v2197
        %v2199 = vpop.f32.mrb[0].mxu0
        %2200 = vmatprep.mubr.f32.mxu0 0.0
        %2201 = vmatmul.mubr.f32.gmra.mrb[0].mxu0 %v2083
        %v2202 = vpop.f32.mrb[0].mxu0
        %v2203 = vadd.f32 0.0, %v2202
        %v2204 = vpop.f32.mrb[0].mxu0
        %2205 = vdwg.mxu0
        %v2206 = vadd.f32 %v2068, %v2168
        %v2207 = vadd.f32 %v2069, %v2173
        %v2208 = vadd.f32 %v2070, %v2178
        %v2209 = vadd.f32 %v2071, %v2183
        %v2210 = vadd.f32 %v2072, %v2188
        %v2211 = vadd.f32 %v2073, %v2193
        %v2212 = vadd.f32 %v2074, %v2198
        %v2213 = vadd.f32 %v2075, %v2203
        %v2214 = vld [vmem:[%s5] sm:$0x1]
        %v2216 = vlaneseq
        %v2217 = vshrl.u32 %v2216, 7
        %v2218 = vsub.s32 0, %v2217
        %v2219 = vrot.slane %v2214, %v2218
        %v2221 = vmul.f32 %v2206, %v2219
        %v2222 = vmul.f32 %v2207, %v2219
        %v2223 = vmul.f32 %v2208, %v2219
        %v2224 = vmul.f32 %v2209, %v2219
        %v2225 = vmul.f32 %v2210, %v2219
        %v2226 = vmul.f32 %v2211, %v2219
        %v2227 = vmul.f32 %v2212, %v2219
        %v2228 = vmul.f32 %v2213, %v2219
        %v2229 = vld [vmem:[%s6] sm:$0x1]
        %v2231 = vlaneseq
        %v2232 = vshrl.u32 %v2231, 7
        %v2233 = vsub.s32 0, %v2232
        %v2234 = vrot.slane %v2229, %v2233
        %v2236 = vadd.f32 %v2221, %v2234
        %v2237 = vadd.f32 %v2222, %v2234
        %v2238 = vadd.f32 %v2223, %v2234
        %v2239 = vadd.f32 %v2224, %v2234
        %v2240 = vadd.f32 %v2225, %v2234
        %v2241 = vadd.f32 %v2226, %v2234
        %v2242 = vadd.f32 %v2227, %v2234
        %v2243 = vadd.f32 %v2228, %v2234
        %v2244 = vmax.f32 %v2236, 0.0
        %v2245 = vmax.f32 %v2237, 0.0
        %v2246 = vmax.f32 %v2238, 0.0
        %v2247 = vmax.f32 %v2239, 0.0
        %v2248 = vmax.f32 %v2240, 0.0
        %v2249 = vmax.f32 %v2241, 0.0
        %v2250 = vmax.f32 %v2242, 0.0
        %v2251 = vmax.f32 %v2243, 0.0
        %2252 = vst [vmem:[%s286] sm:$0xff] %v2244
        %2253 = vst [vmem:[%s286 + $0x8] sm:$0xff] %v2245
        %2254 = vst [vmem:[%s286 + $0x10] sm:$0xff] %v2246
        %2255 = vst [vmem:[%s286 + $0x18] sm:$0xff] %v2247
        %2256 = vst [vmem:[%s286 + $0x20] sm:$0xff] %v2248
        %2257 = vst [vmem:[%s286 + $0x28] sm:$0xff] %v2249
        %2258 = vst [vmem:[%s286 + $0x30] sm:$0xff] %v2250
        %2259 = vst [vmem:[%s286 + $0x38] sm:$0xff] %v2251
        %s2260 = sand.u32 %s182, 1
        %s2261 = scalar_lea.sflag [#allocation6], %s2260
        %s2262 = sand.u32 %s182, 1
        %s2263 = smul.addr %s2262, 64
        %s2264 = scalar_lea.vmem [#allocation7], %s2263
        // Predicated region
        $region53: #{tpu_custom_call.1} parent=47 // pred_check
          %p2265 = pneg %p192
        $region54: #{tpu_custom_call.1} parent=47 // pred_check_branch
          %2267 = sbr.rel (%p2265) target = $region56
        $region55: #{tpu_custom_call.1} parent=47 // pred_region
          %s2269 = ssub.s32 1024, 1024
          %2270 = vsyncadd %s2261, %s2269
          %s2271 = smul.addr %s22, 8
          %s2272 = smul.addr %s2271, 128
          %s2273 = scalar_lea.hbm %s7, %s2272
          %s2274 = sshll.u32 %s2264, 4
          %s2275 = int_to_ptr.vmem [resolvable:$true] %s2274
          %2280 = dma.vmem_to_hbm [thread:$0]  %s2275, 1024, %s2273, %s2261, 128, 128, 8
        $region56: #{tpu_custom_call.1} parent=47 // pred_fallthru
          _
      $region48: #{tpu_custom_call.1} parent=5 // pred_fallthru
        _
      %p2281 = scmp.le.s32.totalorder 2, %s17
      // Predicated region
      $region57: #{tpu_custom_call.1} parent=5 // pred_check
        %p2282 = pneg %p2281
      $region58: #{tpu_custom_call.1} parent=5 // pred_check_branch
        %2284 = sbr.rel (%p2282) target = $region60
      $region59: #{tpu_custom_call.1} parent=5 // pred_region
        %s2285 = ssub.s32 %s17, 2
        // Predicated region
        $region61: #{tpu_custom_call.1} parent=59 // pred_check
          %p2286 = pneg %p198
        $region62: #{tpu_custom_call.1} parent=59 // pred_check_branch
          %2288 = sbr.rel (%p2286) target = $region64
        $region63: #{tpu_custom_call.1} parent=59 // pred_region
          %s2289 = sand.u32 %s183, 1
          %s2290 = scalar_lea.sflag [#allocation6], %s2289
          %s2291 = sand.u32 %s183, 1
          %s2292 = smul.addr %s2291, 64
          %s2293 = scalar_lea.vmem [#allocation7], %s2292
          %2294 = dma.done %s2290, 1024
        $region64: #{tpu_custom_call.1} parent=59 // pred_fallthru
          _
      $region60: #{tpu_custom_call.1} parent=5 // pred_fallthru
        _
    $region6: #{tpu_custom_call.1} parent=1 // loop_footer
      %s21 = sadd.s32 1, %s17
    $region7: #{tpu_custom_call.1} parent=1 // loop_footer_branch
      %16 = sbr.rel target = $region3
    $region8: #{tpu_custom_call.1} parent=1 // loop_exit
      _
    %2295 = vsyncpa [#allocation5], 1
    %s2296 = scalar_lea.sflag [#allocation5], 1
    %2297 = vsyncpa %s2296, 1
    %2298 = vsyncpa [#allocation6], 1
    %s2299 = scalar_lea.sflag [#allocation6], 1
    %2300 = vsyncpa %s2299, 1

</llo_original>
